<compile_context>
chip_gen: v6e
topology: v6e:2x2x1
jax: 0.10.0
libtpu: 0.0.40
codegen_flags: <defaults>
</compile_context>

<pallas_src>
import functools

import jax
import jax.numpy as jnp
import numpy as np
from jax import lax
from jax.experimental import pallas as pl
from jax.experimental.pallas import tpu as pltpu  # noqa: F401  (kept for parity / future scratch use)

EPS = 1e-5


# ---------------------------------------------------------------------------
# Fused kernel: BatchNorm -> input projection -> LSTM recurrence -> fc2/ReLU
#               -> fused lane-dense (m_z | var_z) head.  Gridless, VMEM-resident.
# ---------------------------------------------------------------------------
def _fused_kernel(T, B, H,
                  x_ref, gamma_ref, beta_ref,
                  wih_ref, whh_ref, b_ref,
                  w2_ref, b2_ref, wh_ref, bh_ref,
                  out_ref):
    # ---- BatchNorm1d over all (T*B) samples (train-mode batch stats) ----
    x = x_ref[...]                                           # (T*B, D_in), time-major
    mean = jnp.mean(x, axis=0, keepdims=True)
    var = jnp.mean((x - mean) ** 2, axis=0, keepdims=True)   # biased var (train mode)
    xn = (x - mean) * lax.rsqrt(var + EPS) * gamma_ref[...] + beta_ref[...]

    # ---- input projection for ALL timesteps, bias folded in (off the serial path) ----
    gates_x = (jnp.dot(xn, wih_ref[...],
                       preferred_element_type=jnp.float32,
                       precision=lax.Precision.DEFAULT)
               + b_ref[...])                                 # (T*B, 4H)

    # Pre-extract every per-step slab before the loop (static slices, independent of the
    # recurrence -> scheduler computes them off the serial chain).
    gx = [gates_x[t * B:(t + 1) * B, :] for t in range(T)]   # T x (B, 4H)

    whh = whh_ref[...]                                       # (H, 4H), read once

    # ---- recurrence: only h @ W_hh + gate nonlinearities per step ----
    h = jnp.zeros((B, H), jnp.float32)                       # hidden = (zeros, zeros)
    c = jnp.zeros((B, H), jnp.float32)
    hs = []                                                  # register-resident h_t's
    for t in range(T):                                       # fully unrolled (T is small)
        gates = gx[t] + jnp.dot(h, whh,
                                preferred_element_type=jnp.float32,
                                precision=lax.Precision.DEFAULT)   # (B, 4H)
        sig = jax.nn.sigmoid(gates)                          # single EUP pass over 4H
        i_g = sig[:, 0 * H:1 * H]
        f_g = sig[:, 1 * H:2 * H]
        g_g = 2.0 * sig[:, 2 * H:3 * H] - 1.0                # tanh via pre-scaled sigmoid
        o_g = sig[:, 3 * H:4 * H]
        c = f_g * c + i_g * g_g
        h = o_g * jnp.tanh(c)                                # tanh(c) stays (EUP)
        hs.append(h)

    # ---- assemble hidden slab BATCH-major (row b*T + t), no VMEM scratch ----
    h_rows = [hs[t][b:b + 1, :] for b in range(B) for t in range(T)]  # (1, H) each
    h_all = jnp.concatenate(h_rows, axis=0)                  # (B*T, H)

    # ---- batched fc2/ReLU + fused lane-dense (m_z | var_z | 0-pad) head ----
    hid = jnp.maximum(
        jnp.dot(h_all, w2_ref[...],
                preferred_element_type=jnp.float32,
                precision=lax.Precision.DEFAULT) + b2_ref[...],
        0.0)                                                 # (B*T, H)
    out_ref[...] = (jnp.dot(hid, wh_ref[...],
                            preferred_element_type=jnp.float32,
                            precision=lax.Precision.DEFAULT)
                    + bh_ref[...])                           # (B*T, PAD) unmasked store


# ---------------------------------------------------------------------------
# Wrapper
# ---------------------------------------------------------------------------
def gaussian_lstm_net_forward(x, params):
    B, T, D_in = x.shape
    H = params["w_hh"].shape[1]
    D_out = params["w_mz"].shape[0]
    PAD = max(128, ((2 * D_out + 127) // 128) * 128)         # lane-dense head width

    # time-major, flattened: row t*B + b  <->  (t, b)   (tiny input-side op)
    x_flat = jnp.transpose(x, (1, 0, 2)).reshape(T * B, D_in)

    # Fold the "scale g-gate pre-activation by 2" trick into the weights so the kernel
    # can use a single sigmoid pass:  tanh(z) = 2*sigmoid(2z) - 1.
    g_scale = jnp.concatenate([jnp.ones((2 * H,), jnp.float32),
                               jnp.full((H,), 2.0, jnp.float32),
                               jnp.ones((H,), jnp.float32)])          # (4H,)
    wih_t = params["w_ih"].T * g_scale                       # (D_in, 4H)
    whh_t = params["w_hh"].T * g_scale                       # (H, 4H)
    b_all = ((params["b_ih"] + params["b_hh"]) * g_scale).reshape(1, 4 * H)

    w2_t = params["w_fc2"].T                                 # (H, H)
    b2 = params["b_fc2"].reshape(1, H)

    # fused lane-dense head: [W_mz | W_vz | 0] -> (H, PAD)
    w_head = jnp.zeros((H, PAD), jnp.float32)
    w_head = w_head.at[:, :D_out].set(params["w_mz"].T)
    w_head = w_head.at[:, D_out:2 * D_out].set(params["w_vz"].T)
    b_head = jnp.zeros((1, PAD), jnp.float32)
    b_head = b_head.at[0, :D_out].set(params["b_mz"])
    b_head = b_head.at[0, D_out:2 * D_out].set(params["b_vz"])

    kernel = functools.partial(_fused_kernel, T, B, H)

    # Advisory cost estimate so XLA can schedule around the (tiny) custom call.
    TB = T * B
    flops = int(2 * TB * (D_in * 4 * H + H * 4 * H + H * H + H * PAD) + 30 * TB * H
                + 10 * TB * D_in)
    transcendentals = int(TB * 5 * H)                        # sigmoid(4H) + tanh(H) per row
    bytes_accessed = int(4 * (TB * D_in + 2 * D_in + D_in * 4 * H + H * 4 * H + 4 * H
                              + H * H + H + H * PAD + PAD + TB * PAD))

    out_flat = pl.pallas_call(
        kernel,
        out_shape=jax.ShapeDtypeStruct((B * T, PAD), jnp.float32),   # batch-major rows
        cost_estimate=pl.CostEstimate(flops=flops,
                                      transcendentals=transcendentals,
                                      bytes_accessed=bytes_accessed),
    )(x_flat, params["bn_gamma"], params["bn_beta"],
      wih_t, whh_t, b_all, w2_t, b2, w_head, b_head)

    out = out_flat.reshape(B, T, PAD)                        # contiguous reshape (free)
    m_z = out[..., :D_out]
    var_z = out[..., D_out:2 * D_out]
    return m_z, var_z


# ---------------------------------------------------------------------------
# Deterministic parameter init (PyTorch-like uniform(-1/sqrt(fan), 1/sqrt(fan)))
# ---------------------------------------------------------------------------
def init_params(key, input_dim, output_dim, hidden_dim):
    ks = jax.random.split(key, 10)
    s = 1.0 / np.sqrt(hidden_dim)

    def u(k, shape):
        return jax.random.uniform(k, shape, jnp.float32, -s, s)

    return dict(
        w_ih=u(ks[0], (4 * hidden_dim, input_dim)),
        w_hh=u(ks[1], (4 * hidden_dim, hidden_dim)),
        b_ih=u(ks[2], (4 * hidden_dim,)),
        b_hh=u(ks[3], (4 * hidden_dim,)),
        w_fc2=u(ks[4], (hidden_dim, hidden_dim)),
        b_fc2=u(ks[5], (hidden_dim,)),
        w_mz=u(ks[6], (output_dim, hidden_dim)),
        b_mz=u(ks[7], (output_dim,)),
        w_vz=u(ks[8], (output_dim, hidden_dim)),
        b_vz=u(ks[9], (output_dim,)),
        bn_gamma=jnp.ones((1, input_dim), jnp.float32),   # weight.data.fill_(1)
        bn_beta=jnp.zeros((1, input_dim), jnp.float32),   # bias.data.fill_(0)
    )


# ---------------------------------------------------------------------------
# Pure-JAX reference (for correctness check) -- uses the un-rescaled weights.
# ---------------------------------------------------------------------------
def reference_forward(x, params):
    B, T, D_in = x.shape
    H = params["w_hh"].shape[1]

    xf = x.reshape(B * T, D_in)
    mean = xf.mean(0, keepdims=True)
    var = ((xf - mean) ** 2).mean(0, keepdims=True)
    xn = ((xf - mean) / jnp.sqrt(var + EPS) * params["bn_gamma"]
          + params["bn_beta"]).reshape(B, T, D_in)

    w_ih, w_hh = params["w_ih"], params["w_hh"]
    b = params["b_ih"] + params["b_hh"]

    def step(carry, x_t):
        h, c = carry
        gates = x_t @ w_ih.T + h @ w_hh.T + b
        i = jax.nn.sigmoid(gates[:, 0:H])
        f = jax.nn.sigmoid(gates[:, H:2 * H])
        g = jnp.tanh(gates[:, 2 * H:3 * H])
        o = jax.nn.sigmoid(gates[:, 3 * H:4 * H])
        c = f * c + i * g
        h = o * jnp.tanh(c)
        return (h, c), h

    h0 = jnp.zeros((B, H), jnp.float32)
    c0 = jnp.zeros((B, H), jnp.float32)
    _, outs = lax.scan(step, (h0, c0), jnp.transpose(xn, (1, 0, 2)))
    out = jnp.transpose(outs, (1, 0, 2))  # (B, T, H)

    hid = jax.nn.relu(out @ params["w_fc2"].T + params["b_fc2"])
    m_z = hid @ params["w_mz"].T + params["b_mz"]
    var_z = hid @ params["w_vz"].T + params["b_vz"]
    return m_z, var_z


if __name__ == "__main__":
    B, T, D_in, H, D_out = 2, 8, 16, 32, 8   # batch_size=2, seq=8, input=16, hidden=32, output=8
    key = jax.random.PRNGKey(0)
    k_x, k_p = jax.random.split(key)

    x = jax.random.normal(k_x, (B, T, D_in), jnp.float32)
    params = init_params(k_p, D_in, D_out, H)

    m_z, var_z = jax.jit(gaussian_lstm_net_forward)(x, params)
    jax.block_until_ready((m_z, var_z))

    m_ref, v_ref = reference_forward(x, params)
    assert m_z.shape == (B, T, D_out) and var_z.shape == (B, T, D_out)
    np.testing.assert_allclose(np.asarray(m_z), np.asarray(m_ref), rtol=1e-2, atol=1e-2)
    np.testing.assert_allclose(np.asarray(var_z), np.asarray(v_ref), rtol=1e-2, atol=1e-2)

    print("KERNEL_OK")
</pallas_src>

<mosaic_0001>
module attributes {stable_mosaic.version = 11 : i64} {
  func.func @_fused_kernel(%arg0: memref<16x16xf32, #tpu.memory_space<vmem>>, %arg1: memref<1x16xf32, #tpu.memory_space<vmem>>, %arg2: memref<1x16xf32, #tpu.memory_space<vmem>>, %arg3: memref<16x128xf32, #tpu.memory_space<vmem>>, %arg4: memref<32x128xf32, #tpu.memory_space<vmem>>, %arg5: memref<1x128xf32, #tpu.memory_space<vmem>>, %arg6: memref<32x32xf32, #tpu.memory_space<vmem>>, %arg7: memref<1x32xf32, #tpu.memory_space<vmem>>, %arg8: memref<32x128xf32, #tpu.memory_space<vmem>>, %arg9: memref<1x128xf32, #tpu.memory_space<vmem>>, %arg10: memref<16x128xf32, #tpu.memory_space<vmem>>) attributes {dimension_semantics = [], scalar_prefetch = 0 : i64, scratch_operands = 0 : i64, tpu.core_type = #tpu.core_type<tc>} {
    %c0 = arith.constant 0 : index
    %c0_0 = arith.constant 0 : index
    %0 = vector.load %arg0[%c0, %c0_0] : memref<16x16xf32, #tpu.memory_space<vmem>>, vector<16x16xf32>
    %cst = arith.constant dense<0.000000e+00> : vector<16xf32>
    %1 = vector.multi_reduction <add>, %0, %cst [0] : vector<16x16xf32> to vector<16xf32>
    %2 = vector.shape_cast %1 : vector<16xf32> to vector<1x16xf32>
    %cst_1 = arith.constant 1.600000e+01 : f32
    %3 = vector.broadcast %cst_1 : f32 to vector<1x16xf32>
    %4 = arith.divf %2, %3 : vector<1x16xf32>
    %5 = vector.broadcast %4 : vector<1x16xf32> to vector<16x16xf32>
    %6 = arith.subf %0, %5 : vector<16x16xf32>
    %7 = arith.mulf %6, %6 : vector<16x16xf32>
    %cst_2 = arith.constant dense<0.000000e+00> : vector<16xf32>
    %8 = vector.multi_reduction <add>, %7, %cst_2 [0] : vector<16x16xf32> to vector<16xf32>
    %9 = vector.shape_cast %8 : vector<16xf32> to vector<1x16xf32>
    %cst_3 = arith.constant 1.600000e+01 : f32
    %10 = vector.broadcast %cst_3 : f32 to vector<1x16xf32>
    %11 = arith.divf %9, %10 : vector<1x16xf32>
    %12 = vector.broadcast %4 : vector<1x16xf32> to vector<16x16xf32>
    %13 = arith.subf %0, %12 : vector<16x16xf32>
    %cst_4 = arith.constant 9.99999974E-6 : f32
    %14 = vector.broadcast %cst_4 : f32 to vector<1x16xf32>
    %15 = arith.addf %11, %14 : vector<1x16xf32>
    %16 = math.rsqrt %15 : vector<1x16xf32>
    %17 = vector.broadcast %16 : vector<1x16xf32> to vector<16x16xf32>
    %18 = arith.mulf %13, %17 : vector<16x16xf32>
    %c0_5 = arith.constant 0 : index
    %c0_6 = arith.constant 0 : index
    %19 = vector.load %arg1[%c0_5, %c0_6] : memref<1x16xf32, #tpu.memory_space<vmem>>, vector<1x16xf32>
    %20 = vector.broadcast %19 : vector<1x16xf32> to vector<16x16xf32>
    %21 = arith.mulf %18, %20 : vector<16x16xf32>
    %c0_7 = arith.constant 0 : index
    %c0_8 = arith.constant 0 : index
    %22 = vector.load %arg2[%c0_7, %c0_8] : memref<1x16xf32, #tpu.memory_space<vmem>>, vector<1x16xf32>
    %23 = vector.broadcast %22 : vector<1x16xf32> to vector<16x16xf32>
    %24 = arith.addf %21, %23 : vector<16x16xf32>
    %c0_9 = arith.constant 0 : index
    %c0_10 = arith.constant 0 : index
    %25 = vector.load %arg3[%c0_9, %c0_10] : memref<16x128xf32, #tpu.memory_space<vmem>>, vector<16x128xf32>
    %cst_11 = arith.constant dense<0.000000e+00> : vector<16x128xf32>
    %26 = tpu.matmul %24, %25, %cst_11 {dimension_numbers = #tpu.dot_dimension_numbers<[1], [0], [0], [1], [0, 0, 1, 1], [], []>} : vector<16x16xf32>, vector<16x128xf32>, vector<16x128xf32> -> vector<16x128xf32>
    %c0_12 = arith.constant 0 : index
    %c0_13 = arith.constant 0 : index
    %27 = vector.load %arg5[%c0_12, %c0_13] : memref<1x128xf32, #tpu.memory_space<vmem>>, vector<1x128xf32>
    %28 = vector.broadcast %27 : vector<1x128xf32> to vector<16x128xf32>
    %29 = arith.addf %26, %28 : vector<16x128xf32>
    %30 = vector.extract_strided_slice %29 {offsets = [0, 0], sizes = [2, 128], strides = [1, 1]} : vector<16x128xf32> to vector<2x128xf32>
    %31 = vector.extract_strided_slice %29 {offsets = [2, 0], sizes = [2, 128], strides = [1, 1]} : vector<16x128xf32> to vector<2x128xf32>
    %32 = vector.extract_strided_slice %29 {offsets = [4, 0], sizes = [2, 128], strides = [1, 1]} : vector<16x128xf32> to vector<2x128xf32>
    %33 = vector.extract_strided_slice %29 {offsets = [6, 0], sizes = [2, 128], strides = [1, 1]} : vector<16x128xf32> to vector<2x128xf32>
    %34 = vector.extract_strided_slice %29 {offsets = [8, 0], sizes = [2, 128], strides = [1, 1]} : vector<16x128xf32> to vector<2x128xf32>
    %35 = vector.extract_strided_slice %29 {offsets = [10, 0], sizes = [2, 128], strides = [1, 1]} : vector<16x128xf32> to vector<2x128xf32>
    %36 = vector.extract_strided_slice %29 {offsets = [12, 0], sizes = [2, 128], strides = [1, 1]} : vector<16x128xf32> to vector<2x128xf32>
    %37 = vector.extract_strided_slice %29 {offsets = [14, 0], sizes = [2, 128], strides = [1, 1]} : vector<16x128xf32> to vector<2x128xf32>
    %c0_14 = arith.constant 0 : index
    %c0_15 = arith.constant 0 : index
    %38 = vector.load %arg4[%c0_14, %c0_15] : memref<32x128xf32, #tpu.memory_space<vmem>>, vector<32x128xf32>
    %cst_16 = arith.constant 0.000000e+00 : f32
    %39 = vector.broadcast %cst_16 : f32 to vector<2x32xf32>
    %cst_17 = arith.constant 0.000000e+00 : f32
    %40 = vector.broadcast %cst_17 : f32 to vector<2x32xf32>
    %cst_18 = arith.constant dense<0.000000e+00> : vector<2x128xf32>
    %41 = tpu.matmul %39, %38, %cst_18 {dimension_numbers = #tpu.dot_dimension_numbers<[1], [0], [0], [1], [0, 0, 1, 1], [], []>} : vector<2x32xf32>, vector<32x128xf32>, vector<2x128xf32> -> vector<2x128xf32>
    %42 = arith.addf %30, %41 : vector<2x128xf32>
    %43 = arith.negf %42 : vector<2x128xf32>
    %44 = math.exp %43 : vector<2x128xf32>
    %cst_19 = arith.constant 1.000000e+00 : f32
    %45 = vector.broadcast %cst_19 : f32 to vector<2x128xf32>
    %46 = arith.addf %45, %44 : vector<2x128xf32>
    %47 = arith.divf %45, %46 : vector<2x128xf32>
    %48 = vector.extract_strided_slice %47 {offsets = [0, 0], sizes = [2, 32], strides = [1, 1]} : vector<2x128xf32> to vector<2x32xf32>
    %49 = vector.extract_strided_slice %47 {offsets = [0, 32], sizes = [2, 32], strides = [1, 1]} : vector<2x128xf32> to vector<2x32xf32>
    %50 = vector.extract_strided_slice %47 {offsets = [0, 64], sizes = [2, 32], strides = [1, 1]} : vector<2x128xf32> to vector<2x32xf32>
    %cst_20 = arith.constant 2.000000e+00 : f32
    %51 = vector.broadcast %cst_20 : f32 to vector<2x32xf32>
    %52 = arith.mulf %51, %50 : vector<2x32xf32>
    %cst_21 = arith.constant 1.000000e+00 : f32
    %53 = vector.broadcast %cst_21 : f32 to vector<2x32xf32>
    %54 = arith.subf %52, %53 : vector<2x32xf32>
    %55 = vector.extract_strided_slice %47 {offsets = [0, 96], sizes = [2, 32], strides = [1, 1]} : vector<2x128xf32> to vector<2x32xf32>
    %56 = arith.mulf %49, %40 : vector<2x32xf32>
    %57 = arith.mulf %48, %54 : vector<2x32xf32>
    %58 = arith.addf %56, %57 : vector<2x32xf32>
    %59 = math.tanh %58 : vector<2x32xf32>
    %60 = arith.mulf %55, %59 : vector<2x32xf32>
    %cst_22 = arith.constant dense<0.000000e+00> : vector<2x128xf32>
    %61 = tpu.matmul %60, %38, %cst_22 {dimension_numbers = #tpu.dot_dimension_numbers<[1], [0], [0], [1], [0, 0, 1, 1], [], []>} : vector<2x32xf32>, vector<32x128xf32>, vector<2x128xf32> -> vector<2x128xf32>
    %62 = arith.addf %31, %61 : vector<2x128xf32>
    %63 = arith.negf %62 : vector<2x128xf32>
    %64 = math.exp %63 : vector<2x128xf32>
    %cst_23 = arith.constant 1.000000e+00 : f32
    %65 = vector.broadcast %cst_23 : f32 to vector<2x128xf32>
    %66 = arith.addf %65, %64 : vector<2x128xf32>
    %67 = arith.divf %65, %66 : vector<2x128xf32>
    %68 = vector.extract_strided_slice %67 {offsets = [0, 0], sizes = [2, 32], strides = [1, 1]} : vector<2x128xf32> to vector<2x32xf32>
    %69 = vector.extract_strided_slice %67 {offsets = [0, 32], sizes = [2, 32], strides = [1, 1]} : vector<2x128xf32> to vector<2x32xf32>
    %70 = vector.extract_strided_slice %67 {offsets = [0, 64], sizes = [2, 32], strides = [1, 1]} : vector<2x128xf32> to vector<2x32xf32>
    %cst_24 = arith.constant 2.000000e+00 : f32
    %71 = vector.broadcast %cst_24 : f32 to vector<2x32xf32>
    %72 = arith.mulf %71, %70 : vector<2x32xf32>
    %cst_25 = arith.constant 1.000000e+00 : f32
    %73 = vector.broadcast %cst_25 : f32 to vector<2x32xf32>
    %74 = arith.subf %72, %73 : vector<2x32xf32>
    %75 = vector.extract_strided_slice %67 {offsets = [0, 96], sizes = [2, 32], strides = [1, 1]} : vector<2x128xf32> to vector<2x32xf32>
    %76 = arith.mulf %69, %58 : vector<2x32xf32>
    %77 = arith.mulf %68, %74 : vector<2x32xf32>
    %78 = arith.addf %76, %77 : vector<2x32xf32>
    %79 = math.tanh %78 : vector<2x32xf32>
    %80 = arith.mulf %75, %79 : vector<2x32xf32>
    %cst_26 = arith.constant dense<0.000000e+00> : vector<2x128xf32>
    %81 = tpu.matmul %80, %38, %cst_26 {dimension_numbers = #tpu.dot_dimension_numbers<[1], [0], [0], [1], [0, 0, 1, 1], [], []>} : vector<2x32xf32>, vector<32x128xf32>, vector<2x128xf32> -> vector<2x128xf32>
    %82 = arith.addf %32, %81 : vector<2x128xf32>
    %83 = arith.negf %82 : vector<2x128xf32>
    %84 = math.exp %83 : vector<2x128xf32>
    %cst_27 = arith.constant 1.000000e+00 : f32
    %85 = vector.broadcast %cst_27 : f32 to vector<2x128xf32>
    %86 = arith.addf %85, %84 : vector<2x128xf32>
    %87 = arith.divf %85, %86 : vector<2x128xf32>
    %88 = vector.extract_strided_slice %87 {offsets = [0, 0], sizes = [2, 32], strides = [1, 1]} : vector<2x128xf32> to vector<2x32xf32>
    %89 = vector.extract_strided_slice %87 {offsets = [0, 32], sizes = [2, 32], strides = [1, 1]} : vector<2x128xf32> to vector<2x32xf32>
    %90 = vector.extract_strided_slice %87 {offsets = [0, 64], sizes = [2, 32], strides = [1, 1]} : vector<2x128xf32> to vector<2x32xf32>
    %cst_28 = arith.constant 2.000000e+00 : f32
    %91 = vector.broadcast %cst_28 : f32 to vector<2x32xf32>
    %92 = arith.mulf %91, %90 : vector<2x32xf32>
    %cst_29 = arith.constant 1.000000e+00 : f32
    %93 = vector.broadcast %cst_29 : f32 to vector<2x32xf32>
    %94 = arith.subf %92, %93 : vector<2x32xf32>
    %95 = vector.extract_strided_slice %87 {offsets = [0, 96], sizes = [2, 32], strides = [1, 1]} : vector<2x128xf32> to vector<2x32xf32>
    %96 = arith.mulf %89, %78 : vector<2x32xf32>
    %97 = arith.mulf %88, %94 : vector<2x32xf32>
    %98 = arith.addf %96, %97 : vector<2x32xf32>
    %99 = math.tanh %98 : vector<2x32xf32>
    %100 = arith.mulf %95, %99 : vector<2x32xf32>
    %cst_30 = arith.constant dense<0.000000e+00> : vector<2x128xf32>
    %101 = tpu.matmul %100, %38, %cst_30 {dimension_numbers = #tpu.dot_dimension_numbers<[1], [0], [0], [1], [0, 0, 1, 1], [], []>} : vector<2x32xf32>, vector<32x128xf32>, vector<2x128xf32> -> vector<2x128xf32>
    %102 = arith.addf %33, %101 : vector<2x128xf32>
    %103 = arith.negf %102 : vector<2x128xf32>
    %104 = math.exp %103 : vector<2x128xf32>
    %cst_31 = arith.constant 1.000000e+00 : f32
    %105 = vector.broadcast %cst_31 : f32 to vector<2x128xf32>
    %106 = arith.addf %105, %104 : vector<2x128xf32>
    %107 = arith.divf %105, %106 : vector<2x128xf32>
    %108 = vector.extract_strided_slice %107 {offsets = [0, 0], sizes = [2, 32], strides = [1, 1]} : vector<2x128xf32> to vector<2x32xf32>
    %109 = vector.extract_strided_slice %107 {offsets = [0, 32], sizes = [2, 32], strides = [1, 1]} : vector<2x128xf32> to vector<2x32xf32>
    %110 = vector.extract_strided_slice %107 {offsets = [0, 64], sizes = [2, 32], strides = [1, 1]} : vector<2x128xf32> to vector<2x32xf32>
    %cst_32 = arith.constant 2.000000e+00 : f32
    %111 = vector.broadcast %cst_32 : f32 to vector<2x32xf32>
    %112 = arith.mulf %111, %110 : vector<2x32xf32>
    %cst_33 = arith.constant 1.000000e+00 : f32
    %113 = vector.broadcast %cst_33 : f32 to vector<2x32xf32>
    %114 = arith.subf %112, %113 : vector<2x32xf32>
    %115 = vector.extract_strided_slice %107 {offsets = [0, 96], sizes = [2, 32], strides = [1, 1]} : vector<2x128xf32> to vector<2x32xf32>
    %116 = arith.mulf %109, %98 : vector<2x32xf32>
    %117 = arith.mulf %108, %114 : vector<2x32xf32>
    %118 = arith.addf %116, %117 : vector<2x32xf32>
    %119 = math.tanh %118 : vector<2x32xf32>
    %120 = arith.mulf %115, %119 : vector<2x32xf32>
    %cst_34 = arith.constant dense<0.000000e+00> : vector<2x128xf32>
    %121 = tpu.matmul %120, %38, %cst_34 {dimension_numbers = #tpu.dot_dimension_numbers<[1], [0], [0], [1], [0, 0, 1, 1], [], []>} : vector<2x32xf32>, vector<32x128xf32>, vector<2x128xf32> -> vector<2x128xf32>
    %122 = arith.addf %34, %121 : vector<2x128xf32>
    %123 = arith.negf %122 : vector<2x128xf32>
    %124 = math.exp %123 : vector<2x128xf32>
    %cst_35 = arith.constant 1.000000e+00 : f32
    %125 = vector.broadcast %cst_35 : f32 to vector<2x128xf32>
    %126 = arith.addf %125, %124 : vector<2x128xf32>
    %127 = arith.divf %125, %126 : vector<2x128xf32>
    %128 = vector.extract_strided_slice %127 {offsets = [0, 0], sizes = [2, 32], strides = [1, 1]} : vector<2x128xf32> to vector<2x32xf32>
    %129 = vector.extract_strided_slice %127 {offsets = [0, 32], sizes = [2, 32], strides = [1, 1]} : vector<2x128xf32> to vector<2x32xf32>
    %130 = vector.extract_strided_slice %127 {offsets = [0, 64], sizes = [2, 32], strides = [1, 1]} : vector<2x128xf32> to vector<2x32xf32>
    %cst_36 = arith.constant 2.000000e+00 : f32
    %131 = vector.broadcast %cst_36 : f32 to vector<2x32xf32>
    %132 = arith.mulf %131, %130 : vector<2x32xf32>
    %cst_37 = arith.constant 1.000000e+00 : f32
    %133 = vector.broadcast %cst_37 : f32 to vector<2x32xf32>
    %134 = arith.subf %132, %133 : vector<2x32xf32>
    %135 = vector.extract_strided_slice %127 {offsets = [0, 96], sizes = [2, 32], strides = [1, 1]} : vector<2x128xf32> to vector<2x32xf32>
    %136 = arith.mulf %129, %118 : vector<2x32xf32>
    %137 = arith.mulf %128, %134 : vector<2x32xf32>
    %138 = arith.addf %136, %137 : vector<2x32xf32>
    %139 = math.tanh %138 : vector<2x32xf32>
    %140 = arith.mulf %135, %139 : vector<2x32xf32>
    %cst_38 = arith.constant dense<0.000000e+00> : vector<2x128xf32>
    %141 = tpu.matmul %140, %38, %cst_38 {dimension_numbers = #tpu.dot_dimension_numbers<[1], [0], [0], [1], [0, 0, 1, 1], [], []>} : vector<2x32xf32>, vector<32x128xf32>, vector<2x128xf32> -> vector<2x128xf32>
    %142 = arith.addf %35, %141 : vector<2x128xf32>
    %143 = arith.negf %142 : vector<2x128xf32>
    %144 = math.exp %143 : vector<2x128xf32>
    %cst_39 = arith.constant 1.000000e+00 : f32
    %145 = vector.broadcast %cst_39 : f32 to vector<2x128xf32>
    %146 = arith.addf %145, %144 : vector<2x128xf32>
    %147 = arith.divf %145, %146 : vector<2x128xf32>
    %148 = vector.extract_strided_slice %147 {offsets = [0, 0], sizes = [2, 32], strides = [1, 1]} : vector<2x128xf32> to vector<2x32xf32>
    %149 = vector.extract_strided_slice %147 {offsets = [0, 32], sizes = [2, 32], strides = [1, 1]} : vector<2x128xf32> to vector<2x32xf32>
    %150 = vector.extract_strided_slice %147 {offsets = [0, 64], sizes = [2, 32], strides = [1, 1]} : vector<2x128xf32> to vector<2x32xf32>
    %cst_40 = arith.constant 2.000000e+00 : f32
    %151 = vector.broadcast %cst_40 : f32 to vector<2x32xf32>
    %152 = arith.mulf %151, %150 : vector<2x32xf32>
    %cst_41 = arith.constant 1.000000e+00 : f32
    %153 = vector.broadcast %cst_41 : f32 to vector<2x32xf32>
    %154 = arith.subf %152, %153 : vector<2x32xf32>
    %155 = vector.extract_strided_slice %147 {offsets = [0, 96], sizes = [2, 32], strides = [1, 1]} : vector<2x128xf32> to vector<2x32xf32>
    %156 = arith.mulf %149, %138 : vector<2x32xf32>
    %157 = arith.mulf %148, %154 : vector<2x32xf32>
    %158 = arith.addf %156, %157 : vector<2x32xf32>
    %159 = math.tanh %158 : vector<2x32xf32>
    %160 = arith.mulf %155, %159 : vector<2x32xf32>
    %cst_42 = arith.constant dense<0.000000e+00> : vector<2x128xf32>
    %161 = tpu.matmul %160, %38, %cst_42 {dimension_numbers = #tpu.dot_dimension_numbers<[1], [0], [0], [1], [0, 0, 1, 1], [], []>} : vector<2x32xf32>, vector<32x128xf32>, vector<2x128xf32> -> vector<2x128xf32>
    %162 = arith.addf %36, %161 : vector<2x128xf32>
    %163 = arith.negf %162 : vector<2x128xf32>
    %164 = math.exp %163 : vector<2x128xf32>
    %cst_43 = arith.constant 1.000000e+00 : f32
    %165 = vector.broadcast %cst_43 : f32 to vector<2x128xf32>
    %166 = arith.addf %165, %164 : vector<2x128xf32>
    %167 = arith.divf %165, %166 : vector<2x128xf32>
    %168 = vector.extract_strided_slice %167 {offsets = [0, 0], sizes = [2, 32], strides = [1, 1]} : vector<2x128xf32> to vector<2x32xf32>
    %169 = vector.extract_strided_slice %167 {offsets = [0, 32], sizes = [2, 32], strides = [1, 1]} : vector<2x128xf32> to vector<2x32xf32>
    %170 = vector.extract_strided_slice %167 {offsets = [0, 64], sizes = [2, 32], strides = [1, 1]} : vector<2x128xf32> to vector<2x32xf32>
    %cst_44 = arith.constant 2.000000e+00 : f32
    %171 = vector.broadcast %cst_44 : f32 to vector<2x32xf32>
    %172 = arith.mulf %171, %170 : vector<2x32xf32>
    %cst_45 = arith.constant 1.000000e+00 : f32
    %173 = vector.broadcast %cst_45 : f32 to vector<2x32xf32>
    %174 = arith.subf %172, %173 : vector<2x32xf32>
    %175 = vector.extract_strided_slice %167 {offsets = [0, 96], sizes = [2, 32], strides = [1, 1]} : vector<2x128xf32> to vector<2x32xf32>
    %176 = arith.mulf %169, %158 : vector<2x32xf32>
    %177 = arith.mulf %168, %174 : vector<2x32xf32>
    %178 = arith.addf %176, %177 : vector<2x32xf32>
    %179 = math.tanh %178 : vector<2x32xf32>
    %180 = arith.mulf %175, %179 : vector<2x32xf32>
    %cst_46 = arith.constant dense<0.000000e+00> : vector<2x128xf32>
    %181 = tpu.matmul %180, %38, %cst_46 {dimension_numbers = #tpu.dot_dimension_numbers<[1], [0], [0], [1], [0, 0, 1, 1], [], []>} : vector<2x32xf32>, vector<32x128xf32>, vector<2x128xf32> -> vector<2x128xf32>
    %182 = arith.addf %37, %181 : vector<2x128xf32>
    %183 = arith.negf %182 : vector<2x128xf32>
    %184 = math.exp %183 : vector<2x128xf32>
    %cst_47 = arith.constant 1.000000e+00 : f32
    %185 = vector.broadcast %cst_47 : f32 to vector<2x128xf32>
    %186 = arith.addf %185, %184 : vector<2x128xf32>
    %187 = arith.divf %185, %186 : vector<2x128xf32>
    %188 = vector.extract_strided_slice %187 {offsets = [0, 0], sizes = [2, 32], strides = [1, 1]} : vector<2x128xf32> to vector<2x32xf32>
    %189 = vector.extract_strided_slice %187 {offsets = [0, 32], sizes = [2, 32], strides = [1, 1]} : vector<2x128xf32> to vector<2x32xf32>
    %190 = vector.extract_strided_slice %187 {offsets = [0, 64], sizes = [2, 32], strides = [1, 1]} : vector<2x128xf32> to vector<2x32xf32>
    %cst_48 = arith.constant 2.000000e+00 : f32
    %191 = vector.broadcast %cst_48 : f32 to vector<2x32xf32>
    %192 = arith.mulf %191, %190 : vector<2x32xf32>
    %cst_49 = arith.constant 1.000000e+00 : f32
    %193 = vector.broadcast %cst_49 : f32 to vector<2x32xf32>
    %194 = arith.subf %192, %193 : vector<2x32xf32>
    %195 = vector.extract_strided_slice %187 {offsets = [0, 96], sizes = [2, 32], strides = [1, 1]} : vector<2x128xf32> to vector<2x32xf32>
    %196 = arith.mulf %189, %178 : vector<2x32xf32>
    %197 = arith.mulf %188, %194 : vector<2x32xf32>
    %198 = arith.addf %196, %197 : vector<2x32xf32>
    %199 = math.tanh %198 : vector<2x32xf32>
    %200 = arith.mulf %195, %199 : vector<2x32xf32>
    %201 = vector.extract_strided_slice %60 {offsets = [0, 0], sizes = [1, 32], strides = [1, 1]} : vector<2x32xf32> to vector<1x32xf32>
    %202 = vector.extract_strided_slice %80 {offsets = [0, 0], sizes = [1, 32], strides = [1, 1]} : vector<2x32xf32> to vector<1x32xf32>
    %203 = vector.extract_strided_slice %100 {offsets = [0, 0], sizes = [1, 32], strides = [1, 1]} : vector<2x32xf32> to vector<1x32xf32>
    %204 = vector.extract_strided_slice %120 {offsets = [0, 0], sizes = [1, 32], strides = [1, 1]} : vector<2x32xf32> to vector<1x32xf32>
    %205 = vector.extract_strided_slice %140 {offsets = [0, 0], sizes = [1, 32], strides = [1, 1]} : vector<2x32xf32> to vector<1x32xf32>
    %206 = vector.extract_strided_slice %160 {offsets = [0, 0], sizes = [1, 32], strides = [1, 1]} : vector<2x32xf32> to vector<1x32xf32>
    %207 = vector.extract_strided_slice %180 {offsets = [0, 0], sizes = [1, 32], strides = [1, 1]} : vector<2x32xf32> to vector<1x32xf32>
    %208 = vector.extract_strided_slice %200 {offsets = [0, 0], sizes = [1, 32], strides = [1, 1]} : vector<2x32xf32> to vector<1x32xf32>
    %209 = vector.extract_strided_slice %60 {offsets = [1, 0], sizes = [1, 32], strides = [1, 1]} : vector<2x32xf32> to vector<1x32xf32>
    %210 = vector.extract_strided_slice %80 {offsets = [1, 0], sizes = [1, 32], strides = [1, 1]} : vector<2x32xf32> to vector<1x32xf32>
    %211 = vector.extract_strided_slice %100 {offsets = [1, 0], sizes = [1, 32], strides = [1, 1]} : vector<2x32xf32> to vector<1x32xf32>
    %212 = vector.extract_strided_slice %120 {offsets = [1, 0], sizes = [1, 32], strides = [1, 1]} : vector<2x32xf32> to vector<1x32xf32>
    %213 = vector.extract_strided_slice %140 {offsets = [1, 0], sizes = [1, 32], strides = [1, 1]} : vector<2x32xf32> to vector<1x32xf32>
    %214 = vector.extract_strided_slice %160 {offsets = [1, 0], sizes = [1, 32], strides = [1, 1]} : vector<2x32xf32> to vector<1x32xf32>
    %215 = vector.extract_strided_slice %180 {offsets = [1, 0], sizes = [1, 32], strides = [1, 1]} : vector<2x32xf32> to vector<1x32xf32>
    %216 = vector.extract_strided_slice %200 {offsets = [1, 0], sizes = [1, 32], strides = [1, 1]} : vector<2x32xf32> to vector<1x32xf32>
    %217 = tpu.concatenate %201, %202, %203, %204, %205, %206, %207, %208, %209, %210, %211, %212, %213, %214, %215, %216 in 0 : vector<1x32xf32>, vector<1x32xf32>, vector<1x32xf32>, vector<1x32xf32>, vector<1x32xf32>, vector<1x32xf32>, vector<1x32xf32>, vector<1x32xf32>, vector<1x32xf32>, vector<1x32xf32>, vector<1x32xf32>, vector<1x32xf32>, vector<1x32xf32>, vector<1x32xf32>, vector<1x32xf32>, vector<1x32xf32> -> vector<16x32xf32>
    %c0_50 = arith.constant 0 : index
    %c0_51 = arith.constant 0 : index
    %218 = vector.load %arg6[%c0_50, %c0_51] : memref<32x32xf32, #tpu.memory_space<vmem>>, vector<32x32xf32>
    %cst_52 = arith.constant dense<0.000000e+00> : vector<16x32xf32>
    %219 = tpu.matmul %217, %218, %cst_52 {dimension_numbers = #tpu.dot_dimension_numbers<[1], [0], [0], [1], [0, 0, 1, 1], [], []>} : vector<16x32xf32>, vector<32x32xf32>, vector<16x32xf32> -> vector<16x32xf32>
    %c0_53 = arith.constant 0 : index
    %c0_54 = arith.constant 0 : index
    %220 = vector.load %arg7[%c0_53, %c0_54] : memref<1x32xf32, #tpu.memory_space<vmem>>, vector<1x32xf32>
    %221 = vector.broadcast %220 : vector<1x32xf32> to vector<16x32xf32>
    %222 = arith.addf %219, %221 : vector<16x32xf32>
    %cst_55 = arith.constant 0.000000e+00 : f32
    %223 = vector.broadcast %cst_55 : f32 to vector<16x32xf32>
    %224 = arith.maximumf %222, %223 : vector<16x32xf32>
    %c0_56 = arith.constant 0 : index
    %c0_57 = arith.constant 0 : index
    %225 = vector.load %arg8[%c0_56, %c0_57] : memref<32x128xf32, #tpu.memory_space<vmem>>, vector<32x128xf32>
    %cst_58 = arith.constant dense<0.000000e+00> : vector<16x128xf32>
    %226 = tpu.matmul %224, %225, %cst_58 {dimension_numbers = #tpu.dot_dimension_numbers<[1], [0], [0], [1], [0, 0, 1, 1], [], []>} : vector<16x32xf32>, vector<32x128xf32>, vector<16x128xf32> -> vector<16x128xf32>
    %c0_59 = arith.constant 0 : index
    %c0_60 = arith.constant 0 : index
    %227 = vector.load %arg9[%c0_59, %c0_60] : memref<1x128xf32, #tpu.memory_space<vmem>>, vector<1x128xf32>
    %228 = vector.broadcast %227 : vector<1x128xf32> to vector<16x128xf32>
    %229 = arith.addf %226, %228 : vector<16x128xf32>
    %c0_61 = arith.constant 0 : index
    %c0_62 = arith.constant 0 : index
    %230 = vector.load %arg10[%c0_61, %c0_62] : memref<16x128xf32, #tpu.memory_space<vmem>>, vector<16x128xf32>
    tpu.vector_store %arg10[%c0_61, %c0_62], %229 {strides = array<i32>} : memref<16x128xf32, #tpu.memory_space<vmem>>, vector<16x128xf32>,
    return
  }
}

</mosaic_0001>

<llo_original>
// kernel: gaussian_lstm_net_forward.1
$region0: #{gaussian_lstm_net_forward.1}
  #allocation0 [shape = 'u32[]', space=smem, size = 0x4, offset = 0x4, fixed_abs, tag = 'smem constant byte address 0x4 - core index']
  #allocation1 [shape = 'u32[144,128]{1,0:T(1,128)}', space=vmem, size = 0x12000, scoped, tag = 'internal scratch']
  %s0 = inlined_call_operand.vmem [shape: f32[16,16], index: 0, kind: input, shape index: {}]
  %s1 = inlined_call_operand.vmem [shape: f32[1,16], index: 1, kind: input, shape index: {}]
  %s2 = inlined_call_operand.vmem [shape: f32[1,16], index: 2, kind: input, shape index: {}]
  %s3 = inlined_call_operand.vmem [shape: f32[16,128], index: 3, kind: input, shape index: {}]
  %s4 = inlined_call_operand.vmem [shape: f32[32,128], index: 4, kind: input, shape index: {}]
  %s5 = inlined_call_operand.vmem [shape: f32[1,128], index: 5, kind: input, shape index: {}]
  %s6 = inlined_call_operand.vmem [shape: f32[32,32], index: 6, kind: input, shape index: {}]
  %s7 = inlined_call_operand.vmem [shape: f32[1,32], index: 7, kind: input, shape index: {}]
  %s8 = inlined_call_operand.vmem [shape: f32[32,128], index: 8, kind: input, shape index: {}]
  %s9 = inlined_call_operand.vmem [shape: f32[1,128], index: 9, kind: input, shape index: {}]
  %s10 = inlined_call_operand.vmem [shape: f32[16,128], index: 10, kind: output, shape index: {}]
  %s11 = sld [smem:[#allocation0]]
  $region50: #{gaussian_lstm_net_forward.1} parent=0
    _
  %s13 = ssub.s32 1, %s11
  %s14 = scalar_select 0, %s13, %s11
  // Predicated region
  $region2: #{gaussian_lstm_net_forward.1} parent=0 // pred_check
    _
  $region3: #{gaussian_lstm_net_forward.1} parent=0 // pred_check_branch
    %16 = sbr.rel (0) target = $region5
  $region4: #{gaussian_lstm_net_forward.1} parent=0 // pred_region
    _
  $region5: #{gaussian_lstm_net_forward.1} parent=0 // pred_fallthru
    _
  // Predicated region
  $region6: #{gaussian_lstm_net_forward.1} parent=0 // pred_check
    _
  $region7: #{gaussian_lstm_net_forward.1} parent=0 // pred_check_branch
    %18 = sbr.rel (0) target = $region9
  $region8: #{gaussian_lstm_net_forward.1} parent=0 // pred_region
    _
  $region9: #{gaussian_lstm_net_forward.1} parent=0 // pred_fallthru
    _
  // Predicated region
  $region10: #{gaussian_lstm_net_forward.1} parent=0 // pred_check
    _
  $region11: #{gaussian_lstm_net_forward.1} parent=0 // pred_check_branch
    %20 = sbr.rel (0) target = $region13
  $region12: #{gaussian_lstm_net_forward.1} parent=0 // pred_region
    _
  $region13: #{gaussian_lstm_net_forward.1} parent=0 // pred_fallthru
    _
  // Predicated region
  $region14: #{gaussian_lstm_net_forward.1} parent=0 // pred_check
    _
  $region15: #{gaussian_lstm_net_forward.1} parent=0 // pred_check_branch
    %22 = sbr.rel (0) target = $region17
  $region16: #{gaussian_lstm_net_forward.1} parent=0 // pred_region
    _
  $region17: #{gaussian_lstm_net_forward.1} parent=0 // pred_fallthru
    _
  // Predicated region
  $region18: #{gaussian_lstm_net_forward.1} parent=0 // pred_check
    _
  $region19: #{gaussian_lstm_net_forward.1} parent=0 // pred_check_branch
    %24 = sbr.rel (0) target = $region21
  $region20: #{gaussian_lstm_net_forward.1} parent=0 // pred_region
    _
  $region21: #{gaussian_lstm_net_forward.1} parent=0 // pred_fallthru
    _
  // Predicated region
  $region22: #{gaussian_lstm_net_forward.1} parent=0 // pred_check
    _
  $region23: #{gaussian_lstm_net_forward.1} parent=0 // pred_check_branch
    %26 = sbr.rel (0) target = $region25
  $region24: #{gaussian_lstm_net_forward.1} parent=0 // pred_region
    _
  $region25: #{gaussian_lstm_net_forward.1} parent=0 // pred_fallthru
    _
  // Predicated region
  $region26: #{gaussian_lstm_net_forward.1} parent=0 // pred_check
    _
  $region27: #{gaussian_lstm_net_forward.1} parent=0 // pred_check_branch
    %28 = sbr.rel (0) target = $region29
  $region28: #{gaussian_lstm_net_forward.1} parent=0 // pred_region
    _
  $region29: #{gaussian_lstm_net_forward.1} parent=0 // pred_fallthru
    _
  // Predicated region
  $region30: #{gaussian_lstm_net_forward.1} parent=0 // pred_check
    _
  $region31: #{gaussian_lstm_net_forward.1} parent=0 // pred_check_branch
    %30 = sbr.rel (0) target = $region33
  $region32: #{gaussian_lstm_net_forward.1} parent=0 // pred_region
    _
  $region33: #{gaussian_lstm_net_forward.1} parent=0 // pred_fallthru
    _
  // Predicated region
  $region34: #{gaussian_lstm_net_forward.1} parent=0 // pred_check
    _
  $region35: #{gaussian_lstm_net_forward.1} parent=0 // pred_check_branch
    %32 = sbr.rel (0) target = $region37
  $region36: #{gaussian_lstm_net_forward.1} parent=0 // pred_region
    _
  $region37: #{gaussian_lstm_net_forward.1} parent=0 // pred_fallthru
    _
  // Predicated region
  $region38: #{gaussian_lstm_net_forward.1} parent=0 // pred_check
    _
  $region39: #{gaussian_lstm_net_forward.1} parent=0 // pred_check_branch
    %34 = sbr.rel (0) target = $region41
  $region40: #{gaussian_lstm_net_forward.1} parent=0 // pred_region
    _
  $region41: #{gaussian_lstm_net_forward.1} parent=0 // pred_fallthru
    _
  %v35 = vld [vmem:[%s0] sm:$0xff]
  %v36 = vld [vmem:[%s0 + $0x8] sm:$0xff]
  %vm37 = vcmask 130048
  %v38 = vsel %vm37, %v35, 0.0
  %v39 = vsel %vm37, %v36, 0.0
  %v40 = vadd.f32 %v38, %v39
  %v41 = vrot.slane %v40, 4
  %v42 = vadd.f32 %v40, %v41
  %v43 = vrot.slane %v42, 2
  %v44 = vadd.f32 %v42, %v43
  %v45 = vrot.slane %v44, 1
  %v46 = vadd.f32 %v44, %v45
  %v47 = vrcp.pop 16.0
  %v48 = vmul.f32 %v46, %v47
  %v49 = vsub.f32 %v35, %v48
  %v50 = vsub.f32 %v36, %v48
  %v51 = vmul.f32 %v49, %v49
  %v52 = vmul.f32 %v50, %v50
  %v53 = vsel %vm37, %v51, 0.0
  %v54 = vsel %vm37, %v52, 0.0
  %v55 = vadd.f32 %v53, %v54
  %v56 = vrot.slane %v55, 4
  %v57 = vadd.f32 %v55, %v56
  %v58 = vrot.slane %v57, 2
  %v59 = vadd.f32 %v57, %v58
  %v60 = vrot.slane %v59, 1
  %v61 = vadd.f32 %v59, %v60
  %v62 = vmul.f32 %v61, %v47
  %v63 = vadd.f32 %v62, 1e-05
  %v64 = vrsqrt.pop %v63
  %v65 = vmul.f32 %v49, %v64
  %v66 = vmul.f32 %v50, %v64
  %v67 = vld [vmem:[%s1] sm:$0x1]
  %v69 = vlaneseq
  %v70 = vshrl.u32 %v69, 7
  %v71 = vsub.s32 0, %v70
  %v72 = vrot.slane %v67, %v71
  %v74 = vmul.f32 %v65, %v72
  %v75 = vmul.f32 %v66, %v72
  %v76 = vld [vmem:[%s2] sm:$0x1]
  %v78 = vlaneseq
  %v79 = vshrl.u32 %v78, 7
  %v80 = vsub.s32 0, %v79
  %v81 = vrot.slane %v76, %v80
  %v83 = vadd.f32 %v74, %v81
  %v84 = vadd.f32 %v75, %v81
  %v85 = vld [vmem:[%s3] sm:$0xff]
  %v86 = vld [vmem:[%s3 + $0x8] sm:$0xff]
  %v87 = vld [vmem:[%s5] sm:$0x1]
  %v89 = vlaneseq
  %v90 = vshrl.u32 %v89, 7
  %v91 = vsub.s32 0, %v90
  %v92 = vrot.slane %v87, %v91
  %v95 = vsel %vm37, %v83, 0
  %v98 = vsel %vm37, %v84, 0
  %100 = vmatprep.subr.mxu0 0.0
  %101 = vmatpush1.msra.mxu0 0.0
  %102 = vmatprep.subr.mxu0 0.0
  %103 = vmatpush1.msra.mxu0 0.0
  %104 = vmatprep.subr.mxu0 0.0
  %105 = vmatpush1.msra.mxu0 0.0
  %106 = vmatprep.subr.mxu0 0.0
  %107 = vmatpush1.msra.mxu0 0.0
  %108 = vmatprep.subr.mxu0 0.0
  %109 = vmatpush1.msra.mxu0 0.0
  %110 = vmatprep.subr.mxu0 0.0
  %111 = vmatpush1.msra.mxu0 0.0
  %112 = vmatprep.subr.mxu0 0.0
  %113 = vmatpush1.msra.mxu0 0.0
  %114 = vmatprep.subr.mxu0 0.0
  %115 = vmatpush1.msra.mxu0 0.0
  %116 = vmatprep.subr.mxu0 0.0
  %117 = vmatpush1.msra.mxu0 0.0
  %118 = vmatprep.subr.mxu0 0.0
  %119 = vmatpush1.msra.mxu0 0.0
  %120 = vmatprep.subr.mxu0 0.0
  %121 = vmatpush1.msra.mxu0 0.0
  %122 = vmatprep.subr.mxu0 0.0
  %123 = vmatpush1.msra.mxu0 0.0
  %124 = vmatprep.subr.mxu0 0.0
  %125 = vmatpush1.msra.mxu0 0.0
  %126 = vmatprep.subr.mxu0 0.0
  %127 = vmatpush1.msra.mxu0 0.0
  %128 = vmatprep.subr.mxu0 0.0
  %129 = vmatpush1.msra.mxu0 %v86
  %130 = vmatprep.subr.mxu0 0.0
  %131 = vmatpush1.msra.mxu0 %v85
  %132 = vmatprep.subr.mxu0 0.0
  %133 = vmatpush2.msra.mxu0 0.0
  %134 = vmatprep.subr.mxu0 0.0
  %135 = vmatpush2.msra.mxu0 0.0
  %136 = vmatprep.subr.mxu0 0.0
  %137 = vmatpush2.msra.mxu0 0.0
  %138 = vmatprep.subr.mxu0 0.0
  %139 = vmatpush2.msra.mxu0 0.0
  %140 = vmatprep.subr.mxu0 0.0
  %141 = vmatpush2.msra.mxu0 0.0
  %142 = vmatprep.subr.mxu0 0.0
  %143 = vmatpush2.msra.mxu0 0.0
  %144 = vmatprep.subr.mxu0 0.0
  %145 = vmatpush2.msra.mxu0 0.0
  %146 = vmatprep.subr.mxu0 0.0
  %147 = vmatpush2.msra.mxu0 0.0
  %148 = vmatprep.subr.mxu0 0.0
  %149 = vmatpush2.msra.mxu0 0.0
  %150 = vmatprep.subr.mxu0 0.0
  %151 = vmatpush2.msra.mxu0 0.0
  %152 = vmatprep.subr.mxu0 0.0
  %153 = vmatpush2.msra.mxu0 0.0
  %154 = vmatprep.subr.mxu0 0.0
  %155 = vmatpush2.msra.mxu0 0.0
  %156 = vmatprep.subr.mxu0 0.0
  %157 = vmatpush2.msra.mxu0 0.0
  %158 = vmatprep.subr.mxu0 0.0
  %159 = vmatpush2.msra.mxu0 0.0
  %160 = vmatprep.subr.mxu0 0.0
  %161 = vmatpush2.msra.mxu0 0.0
  %162 = vmatprep.subr.mxu0 0.0
  %163 = vmatpush2.msra.mxu0 0.0
  %164 = vmatprep.mubr.f32.mxu0 0.0
  %165 = vmatmul.mubr.f32.gmra.mxu0 %v95
  %v166 = vpop.f32.mrf.mxu0
  %v167 = vadd.f32 %v92, %v166
  %v168 = vpop.f32.mrf.mxu0
  %169 = vmatprep.mubr.f32.mxu0 0.0
  %170 = vmatmul.mubr.f32.gmra.mxu0 %v98
  %v171 = vpop.f32.mrf.mxu0
  %v172 = vadd.f32 %v92, %v171
  %v173 = vpop.f32.mrf.mxu0
  %174 = vdwg.mxu0
  %v175 = vld [vmem:[%s4] sm:$0xff]
  %v176 = vld [vmem:[%s4 + $0x8] sm:$0xff]
  %v177 = vld [vmem:[%s4 + $0x10] sm:$0xff]
  %v178 = vld [vmem:[%s4 + $0x18] sm:$0xff]
  %vm179 = vcmask 261120
  %v181 = vsel %vm179, 0.0, 0
  %183 = vmatprep.subr.mxu0 0.0
  %184 = vmatpush1.msra.mxu0 0.0
  %185 = vmatprep.subr.mxu0 0.0
  %186 = vmatpush1.msra.mxu0 0.0
  %187 = vmatprep.subr.mxu0 0.0
  %188 = vmatpush1.msra.mxu0 0.0
  %189 = vmatprep.subr.mxu0 0.0
  %190 = vmatpush1.msra.mxu0 0.0
  %191 = vmatprep.subr.mxu0 0.0
  %192 = vmatpush1.msra.mxu0 0.0
  %193 = vmatprep.subr.mxu0 0.0
  %194 = vmatpush1.msra.mxu0 0.0
  %195 = vmatprep.subr.mxu0 0.0
  %196 = vmatpush1.msra.mxu0 0.0
  %197 = vmatprep.subr.mxu0 0.0
  %198 = vmatpush1.msra.mxu0 0.0
  %199 = vmatprep.subr.mxu0 0.0
  %200 = vmatpush1.msra.mxu0 0.0
  %201 = vmatprep.subr.mxu0 0.0
  %202 = vmatpush1.msra.mxu0 0.0
  %203 = vmatprep.subr.mxu0 0.0
  %204 = vmatpush1.msra.mxu0 0.0
  %205 = vmatprep.subr.mxu0 0.0
  %206 = vmatpush1.msra.mxu0 0.0
  %207 = vmatprep.subr.mxu0 0.0
  %208 = vmatpush1.msra.mxu0 %v178
  %209 = vmatprep.subr.mxu0 0.0
  %210 = vmatpush1.msra.mxu0 %v177
  %211 = vmatprep.subr.mxu0 0.0
  %212 = vmatpush1.msra.mxu0 %v176
  %213 = vmatprep.subr.mxu0 0.0
  %214 = vmatpush1.msra.mxu0 %v175
  %215 = vmatprep.subr.mxu0 0.0
  %216 = vmatpush2.msra.mxu0 0.0
  %217 = vmatprep.subr.mxu0 0.0
  %218 = vmatpush2.msra.mxu0 0.0
  %219 = vmatprep.subr.mxu0 0.0
  %220 = vmatpush2.msra.mxu0 0.0
  %221 = vmatprep.subr.mxu0 0.0
  %222 = vmatpush2.msra.mxu0 0.0
  %223 = vmatprep.subr.mxu0 0.0
  %224 = vmatpush2.msra.mxu0 0.0
  %225 = vmatprep.subr.mxu0 0.0
  %226 = vmatpush2.msra.mxu0 0.0
  %227 = vmatprep.subr.mxu0 0.0
  %228 = vmatpush2.msra.mxu0 0.0
  %229 = vmatprep.subr.mxu0 0.0
  %230 = vmatpush2.msra.mxu0 0.0
  %231 = vmatprep.subr.mxu0 0.0
  %232 = vmatpush2.msra.mxu0 0.0
  %233 = vmatprep.subr.mxu0 0.0
  %234 = vmatpush2.msra.mxu0 0.0
  %235 = vmatprep.subr.mxu0 0.0
  %236 = vmatpush2.msra.mxu0 0.0
  %237 = vmatprep.subr.mxu0 0.0
  %238 = vmatpush2.msra.mxu0 0.0
  %239 = vmatprep.subr.mxu0 0.0
  %240 = vmatpush2.msra.mxu0 0.0
  %241 = vmatprep.subr.mxu0 0.0
  %242 = vmatpush2.msra.mxu0 0.0
  %243 = vmatprep.subr.mxu0 0.0
  %244 = vmatpush2.msra.mxu0 0.0
  %245 = vmatprep.subr.mxu0 0.0
  %246 = vmatpush2.msra.mxu0 0.0
  %247 = vmatprep.mubr.f32.mxu0 0.0
  %248 = vmatmul.mubr.f32.gmra.mxu0 %v181
  %v249 = vpop.f32.mrf.mxu0
  %v250 = vadd.f32 0.0, %v249
  %v251 = vpop.f32.mrf.mxu0
  %252 = vdwg.mxu0
  %v253 = vadd.f32 %v167, %v250
  %v254 = vxor.u32 %v253, 2147483648
  %v255 = vmul.f32 %v254, 1.442695
  %v256 = vpow.pop %v255
  %v257 = vadd.f32 %v256, 1.0
  %v258 = vrcp.pop %v257
  %v259 = vmul.f32 1.0, %v258
  %v260 = vmul.f32 %v259, 2.0
  %v261 = vsub.f32 %v260, 1.0
  %v262 = vmul.f32 %v259, 0.0
  %264 = vrot.lane.b32.xlu0 %v261, 64
  %v265 = vpop.permute.xlu0 %264
  %v267 = vmul.f32 %v259, %v265
  %269 = vrot.lane.b32.xlu0 %v267, 32
  %v270 = vpop.permute.xlu0 %269
  %v272 = vadd.f32 %v262, %v270
  %v273 = vtanh.pop %v272
  %275 = vrot.lane.b32.xlu0 %v273, 64
  %v276 = vpop.permute.xlu0 %275
  %v278 = vmul.f32 %v259, %v276
  %280 = vrot.lane.b32.xlu0 %v278, 32
  %v281 = vpop.permute.xlu0 %280
  %v282 = vsel %vm179, %v281, 0
  %284 = vmatprep.subr.mxu0 0.0
  %285 = vmatpush1.msra.mxu0 0.0
  %286 = vmatprep.subr.mxu0 0.0
  %287 = vmatpush1.msra.mxu0 0.0
  %288 = vmatprep.subr.mxu0 0.0
  %289 = vmatpush1.msra.mxu0 0.0
  %290 = vmatprep.subr.mxu0 0.0
  %291 = vmatpush1.msra.mxu0 0.0
  %292 = vmatprep.subr.mxu0 0.0
  %293 = vmatpush1.msra.mxu0 0.0
  %294 = vmatprep.subr.mxu0 0.0
  %295 = vmatpush1.msra.mxu0 0.0
  %296 = vmatprep.subr.mxu0 0.0
  %297 = vmatpush1.msra.mxu0 0.0
  %298 = vmatprep.subr.mxu0 0.0
  %299 = vmatpush1.msra.mxu0 0.0
  %300 = vmatprep.subr.mxu0 0.0
  %301 = vmatpush1.msra.mxu0 0.0
  %302 = vmatprep.subr.mxu0 0.0
  %303 = vmatpush1.msra.mxu0 0.0
  %304 = vmatprep.subr.mxu0 0.0
  %305 = vmatpush1.msra.mxu0 0.0
  %306 = vmatprep.subr.mxu0 0.0
  %307 = vmatpush1.msra.mxu0 0.0
  %308 = vmatprep.subr.mxu0 0.0
  %309 = vmatpush1.msra.mxu0 %v178
  %310 = vmatprep.subr.mxu0 0.0
  %311 = vmatpush1.msra.mxu0 %v177
  %312 = vmatprep.subr.mxu0 0.0
  %313 = vmatpush1.msra.mxu0 %v176
  %314 = vmatprep.subr.mxu0 0.0
  %315 = vmatpush1.msra.mxu0 %v175
  %316 = vmatprep.subr.mxu0 0.0
  %317 = vmatpush2.msra.mxu0 0.0
  %318 = vmatprep.subr.mxu0 0.0
  %319 = vmatpush2.msra.mxu0 0.0
  %320 = vmatprep.subr.mxu0 0.0
  %321 = vmatpush2.msra.mxu0 0.0
  %322 = vmatprep.subr.mxu0 0.0
  %323 = vmatpush2.msra.mxu0 0.0
  %324 = vmatprep.subr.mxu0 0.0
  %325 = vmatpush2.msra.mxu0 0.0
  %326 = vmatprep.subr.mxu0 0.0
  %327 = vmatpush2.msra.mxu0 0.0
  %328 = vmatprep.subr.mxu0 0.0
  %329 = vmatpush2.msra.mxu0 0.0
  %330 = vmatprep.subr.mxu0 0.0
  %331 = vmatpush2.msra.mxu0 0.0
  %332 = vmatprep.subr.mxu0 0.0
  %333 = vmatpush2.msra.mxu0 0.0
  %334 = vmatprep.subr.mxu0 0.0
  %335 = vmatpush2.msra.mxu0 0.0
  %336 = vmatprep.subr.mxu0 0.0
  %337 = vmatpush2.msra.mxu0 0.0
  %338 = vmatprep.subr.mxu0 0.0
  %339 = vmatpush2.msra.mxu0 0.0
  %340 = vmatprep.subr.mxu0 0.0
  %341 = vmatpush2.msra.mxu0 0.0
  %342 = vmatprep.subr.mxu0 0.0
  %343 = vmatpush2.msra.mxu0 0.0
  %344 = vmatprep.subr.mxu0 0.0
  %345 = vmatpush2.msra.mxu0 0.0
  %346 = vmatprep.subr.mxu0 0.0
  %347 = vmatpush2.msra.mxu0 0.0
  %348 = vmatprep.mubr.f32.mxu0 0.0
  %349 = vmatmul.mubr.f32.gmra.mxu0 %v282
  %v350 = vpop.f32.mrf.mxu0
  %v351 = vadd.f32 0.0, %v350
  %v352 = vpop.f32.mrf.mxu0
  %353 = vdwg.mxu0
  %v355 = vrot.slane %v351, 6
  %v357 = vadd.f32 %v167, %v355
  %v358 = vxor.u32 %v357, 2147483648
  %v359 = vmul.f32 %v358, 1.442695
  %v360 = vpow.pop %v359
  %v361 = vadd.f32 %v360, 1.0
  %v362 = vrcp.pop %v361
  %v363 = vmul.f32 1.0, %v362
  %v364 = vmul.f32 %v363, 2.0
  %v365 = vsub.f32 %v364, 1.0
  %v367 = vrot.slane %v272, 6
  %v369 = vmul.f32 %v363, %v367
  %371 = vrot.lane.b32.xlu0 %v365, 64
  %v372 = vpop.permute.xlu0 %371
  %v374 = vmul.f32 %v363, %v372
  %376 = vrot.lane.b32.xlu0 %v374, 32
  %v377 = vpop.permute.xlu0 %376
  %v379 = vadd.f32 %v369, %v377
  %v380 = vtanh.pop %v379
  %382 = vrot.lane.b32.xlu0 %v380, 64
  %v383 = vpop.permute.xlu0 %382
  %v385 = vmul.f32 %v363, %v383
  %v387 = vrot.slane %v385, 2
  %388 = vrot.lane.b32.xlu0 %v387, 32
  %v389 = vpop.permute.xlu0 %388
  %v390 = vsel %vm179, %v389, 0
  %392 = vmatprep.subr.mxu0 0.0
  %393 = vmatpush1.msra.mxu0 0.0
  %394 = vmatprep.subr.mxu0 0.0
  %395 = vmatpush1.msra.mxu0 0.0
  %396 = vmatprep.subr.mxu0 0.0
  %397 = vmatpush1.msra.mxu0 0.0
  %398 = vmatprep.subr.mxu0 0.0
  %399 = vmatpush1.msra.mxu0 0.0
  %400 = vmatprep.subr.mxu0 0.0
  %401 = vmatpush1.msra.mxu0 0.0
  %402 = vmatprep.subr.mxu0 0.0
  %403 = vmatpush1.msra.mxu0 0.0
  %404 = vmatprep.subr.mxu0 0.0
  %405 = vmatpush1.msra.mxu0 0.0
  %406 = vmatprep.subr.mxu0 0.0
  %407 = vmatpush1.msra.mxu0 0.0
  %408 = vmatprep.subr.mxu0 0.0
  %409 = vmatpush1.msra.mxu0 0.0
  %410 = vmatprep.subr.mxu0 0.0
  %411 = vmatpush1.msra.mxu0 0.0
  %412 = vmatprep.subr.mxu0 0.0
  %413 = vmatpush1.msra.mxu0 0.0
  %414 = vmatprep.subr.mxu0 0.0
  %415 = vmatpush1.msra.mxu0 0.0
  %416 = vmatprep.subr.mxu0 0.0
  %417 = vmatpush1.msra.mxu0 %v178
  %418 = vmatprep.subr.mxu0 0.0
  %419 = vmatpush1.msra.mxu0 %v177
  %420 = vmatprep.subr.mxu0 0.0
  %421 = vmatpush1.msra.mxu0 %v176
  %422 = vmatprep.subr.mxu0 0.0
  %423 = vmatpush1.msra.mxu0 %v175
  %424 = vmatprep.subr.mxu0 0.0
  %425 = vmatpush2.msra.mxu0 0.0
  %426 = vmatprep.subr.mxu0 0.0
  %427 = vmatpush2.msra.mxu0 0.0
  %428 = vmatprep.subr.mxu0 0.0
  %429 = vmatpush2.msra.mxu0 0.0
  %430 = vmatprep.subr.mxu0 0.0
  %431 = vmatpush2.msra.mxu0 0.0
  %432 = vmatprep.subr.mxu0 0.0
  %433 = vmatpush2.msra.mxu0 0.0
  %434 = vmatprep.subr.mxu0 0.0
  %435 = vmatpush2.msra.mxu0 0.0
  %436 = vmatprep.subr.mxu0 0.0
  %437 = vmatpush2.msra.mxu0 0.0
  %438 = vmatprep.subr.mxu0 0.0
  %439 = vmatpush2.msra.mxu0 0.0
  %440 = vmatprep.subr.mxu0 0.0
  %441 = vmatpush2.msra.mxu0 0.0
  %442 = vmatprep.subr.mxu0 0.0
  %443 = vmatpush2.msra.mxu0 0.0
  %444 = vmatprep.subr.mxu0 0.0
  %445 = vmatpush2.msra.mxu0 0.0
  %446 = vmatprep.subr.mxu0 0.0
  %447 = vmatpush2.msra.mxu0 0.0
  %448 = vmatprep.subr.mxu0 0.0
  %449 = vmatpush2.msra.mxu0 0.0
  %450 = vmatprep.subr.mxu0 0.0
  %451 = vmatpush2.msra.mxu0 0.0
  %452 = vmatprep.subr.mxu0 0.0
  %453 = vmatpush2.msra.mxu0 0.0
  %454 = vmatprep.subr.mxu0 0.0
  %455 = vmatpush2.msra.mxu0 0.0
  %456 = vmatprep.mubr.f32.mxu0 0.0
  %457 = vmatmul.mubr.f32.gmra.mxu0 %v390
  %v458 = vpop.f32.mrf.mxu0
  %v459 = vadd.f32 0.0, %v458
  %v460 = vpop.f32.mrf.mxu0
  %461 = vdwg.mxu0
  %v463 = vrot.slane %v459, 4
  %v465 = vadd.f32 %v167, %v463
  %v466 = vxor.u32 %v465, 2147483648
  %v467 = vmul.f32 %v466, 1.442695
  %v468 = vpow.pop %v467
  %v469 = vadd.f32 %v468, 1.0
  %v470 = vrcp.pop %v469
  %v471 = vmul.f32 1.0, %v470
  %v472 = vmul.f32 %v471, 2.0
  %v473 = vsub.f32 %v472, 1.0
  %v475 = vrot.slane %v379, 6
  %v477 = vmul.f32 %v471, %v475
  %479 = vrot.lane.b32.xlu0 %v473, 64
  %v480 = vpop.permute.xlu0 %479
  %v482 = vmul.f32 %v471, %v480
  %484 = vrot.lane.b32.xlu0 %v482, 32
  %v485 = vpop.permute.xlu0 %484
  %v487 = vadd.f32 %v477, %v485
  %v488 = vtanh.pop %v487
  %490 = vrot.lane.b32.xlu0 %v488, 64
  %v491 = vpop.permute.xlu0 %490
  %v493 = vmul.f32 %v471, %v491
  %v495 = vrot.slane %v493, 4
  %496 = vrot.lane.b32.xlu0 %v495, 32
  %v497 = vpop.permute.xlu0 %496
  %v498 = vsel %vm179, %v497, 0
  %500 = vmatprep.subr.mxu0 0.0
  %501 = vmatpush1.msra.mxu0 0.0
  %502 = vmatprep.subr.mxu0 0.0
  %503 = vmatpush1.msra.mxu0 0.0
  %504 = vmatprep.subr.mxu0 0.0
  %505 = vmatpush1.msra.mxu0 0.0
  %506 = vmatprep.subr.mxu0 0.0
  %507 = vmatpush1.msra.mxu0 0.0
  %508 = vmatprep.subr.mxu0 0.0
  %509 = vmatpush1.msra.mxu0 0.0
  %510 = vmatprep.subr.mxu0 0.0
  %511 = vmatpush1.msra.mxu0 0.0
  %512 = vmatprep.subr.mxu0 0.0
  %513 = vmatpush1.msra.mxu0 0.0
  %514 = vmatprep.subr.mxu0 0.0
  %515 = vmatpush1.msra.mxu0 0.0
  %516 = vmatprep.subr.mxu0 0.0
  %517 = vmatpush1.msra.mxu0 0.0
  %518 = vmatprep.subr.mxu0 0.0
  %519 = vmatpush1.msra.mxu0 0.0
  %520 = vmatprep.subr.mxu0 0.0
  %521 = vmatpush1.msra.mxu0 0.0
  %522 = vmatprep.subr.mxu0 0.0
  %523 = vmatpush1.msra.mxu0 0.0
  %524 = vmatprep.subr.mxu0 0.0
  %525 = vmatpush1.msra.mxu0 %v178
  %526 = vmatprep.subr.mxu0 0.0
  %527 = vmatpush1.msra.mxu0 %v177
  %528 = vmatprep.subr.mxu0 0.0
  %529 = vmatpush1.msra.mxu0 %v176
  %530 = vmatprep.subr.mxu0 0.0
  %531 = vmatpush1.msra.mxu0 %v175
  %532 = vmatprep.subr.mxu0 0.0
  %533 = vmatpush2.msra.mxu0 0.0
  %534 = vmatprep.subr.mxu0 0.0
  %535 = vmatpush2.msra.mxu0 0.0
  %536 = vmatprep.subr.mxu0 0.0
  %537 = vmatpush2.msra.mxu0 0.0
  %538 = vmatprep.subr.mxu0 0.0
  %539 = vmatpush2.msra.mxu0 0.0
  %540 = vmatprep.subr.mxu0 0.0
  %541 = vmatpush2.msra.mxu0 0.0
  %542 = vmatprep.subr.mxu0 0.0
  %543 = vmatpush2.msra.mxu0 0.0
  %544 = vmatprep.subr.mxu0 0.0
  %545 = vmatpush2.msra.mxu0 0.0
  %546 = vmatprep.subr.mxu0 0.0
  %547 = vmatpush2.msra.mxu0 0.0
  %548 = vmatprep.subr.mxu0 0.0
  %549 = vmatpush2.msra.mxu0 0.0
  %550 = vmatprep.subr.mxu0 0.0
  %551 = vmatpush2.msra.mxu0 0.0
  %552 = vmatprep.subr.mxu0 0.0
  %553 = vmatpush2.msra.mxu0 0.0
  %554 = vmatprep.subr.mxu0 0.0
  %555 = vmatpush2.msra.mxu0 0.0
  %556 = vmatprep.subr.mxu0 0.0
  %557 = vmatpush2.msra.mxu0 0.0
  %558 = vmatprep.subr.mxu0 0.0
  %559 = vmatpush2.msra.mxu0 0.0
  %560 = vmatprep.subr.mxu0 0.0
  %561 = vmatpush2.msra.mxu0 0.0
  %562 = vmatprep.subr.mxu0 0.0
  %563 = vmatpush2.msra.mxu0 0.0
  %564 = vmatprep.mubr.f32.mxu0 0.0
  %565 = vmatmul.mubr.f32.gmra.mxu0 %v498
  %v566 = vpop.f32.mrf.mxu0
  %v567 = vadd.f32 0.0, %v566
  %v568 = vpop.f32.mrf.mxu0
  %569 = vdwg.mxu0
  %v571 = vrot.slane %v567, 2
  %v573 = vadd.f32 %v167, %v571
  %v574 = vxor.u32 %v573, 2147483648
  %v575 = vmul.f32 %v574, 1.442695
  %v576 = vpow.pop %v575
  %v577 = vadd.f32 %v576, 1.0
  %v578 = vrcp.pop %v577
  %v579 = vmul.f32 1.0, %v578
  %v580 = vmul.f32 %v579, 2.0
  %v581 = vsub.f32 %v580, 1.0
  %v583 = vrot.slane %v487, 6
  %v585 = vmul.f32 %v579, %v583
  %587 = vrot.lane.b32.xlu0 %v581, 64
  %v588 = vpop.permute.xlu0 %587
  %v590 = vmul.f32 %v579, %v588
  %592 = vrot.lane.b32.xlu0 %v590, 32
  %v593 = vpop.permute.xlu0 %592
  %v595 = vadd.f32 %v585, %v593
  %v596 = vtanh.pop %v595
  %598 = vrot.lane.b32.xlu0 %v596, 64
  %v599 = vpop.permute.xlu0 %598
  %v601 = vmul.f32 %v579, %v599
  %v603 = vrot.slane %v601, 6
  %604 = vrot.lane.b32.xlu0 %v603, 32
  %v605 = vpop.permute.xlu0 %604
  %v606 = vsel %vm179, %v605, 0
  %608 = vmatprep.subr.mxu0 0.0
  %609 = vmatpush1.msra.mxu0 0.0
  %610 = vmatprep.subr.mxu0 0.0
  %611 = vmatpush1.msra.mxu0 0.0
  %612 = vmatprep.subr.mxu0 0.0
  %613 = vmatpush1.msra.mxu0 0.0
  %614 = vmatprep.subr.mxu0 0.0
  %615 = vmatpush1.msra.mxu0 0.0
  %616 = vmatprep.subr.mxu0 0.0
  %617 = vmatpush1.msra.mxu0 0.0
  %618 = vmatprep.subr.mxu0 0.0
  %619 = vmatpush1.msra.mxu0 0.0
  %620 = vmatprep.subr.mxu0 0.0
  %621 = vmatpush1.msra.mxu0 0.0
  %622 = vmatprep.subr.mxu0 0.0
  %623 = vmatpush1.msra.mxu0 0.0
  %624 = vmatprep.subr.mxu0 0.0
  %625 = vmatpush1.msra.mxu0 0.0
  %626 = vmatprep.subr.mxu0 0.0
  %627 = vmatpush1.msra.mxu0 0.0
  %628 = vmatprep.subr.mxu0 0.0
  %629 = vmatpush1.msra.mxu0 0.0
  %630 = vmatprep.subr.mxu0 0.0
  %631 = vmatpush1.msra.mxu0 0.0
  %632 = vmatprep.subr.mxu0 0.0
  %633 = vmatpush1.msra.mxu0 %v178
  %634 = vmatprep.subr.mxu0 0.0
  %635 = vmatpush1.msra.mxu0 %v177
  %636 = vmatprep.subr.mxu0 0.0
  %637 = vmatpush1.msra.mxu0 %v176
  %638 = vmatprep.subr.mxu0 0.0
  %639 = vmatpush1.msra.mxu0 %v175
  %640 = vmatprep.subr.mxu0 0.0
  %641 = vmatpush2.msra.mxu0 0.0
  %642 = vmatprep.subr.mxu0 0.0
  %643 = vmatpush2.msra.mxu0 0.0
  %644 = vmatprep.subr.mxu0 0.0
  %645 = vmatpush2.msra.mxu0 0.0
  %646 = vmatprep.subr.mxu0 0.0
  %647 = vmatpush2.msra.mxu0 0.0
  %648 = vmatprep.subr.mxu0 0.0
  %649 = vmatpush2.msra.mxu0 0.0
  %650 = vmatprep.subr.mxu0 0.0
  %651 = vmatpush2.msra.mxu0 0.0
  %652 = vmatprep.subr.mxu0 0.0
  %653 = vmatpush2.msra.mxu0 0.0
  %654 = vmatprep.subr.mxu0 0.0
  %655 = vmatpush2.msra.mxu0 0.0
  %656 = vmatprep.subr.mxu0 0.0
  %657 = vmatpush2.msra.mxu0 0.0
  %658 = vmatprep.subr.mxu0 0.0
  %659 = vmatpush2.msra.mxu0 0.0
  %660 = vmatprep.subr.mxu0 0.0
  %661 = vmatpush2.msra.mxu0 0.0
  %662 = vmatprep.subr.mxu0 0.0
  %663 = vmatpush2.msra.mxu0 0.0
  %664 = vmatprep.subr.mxu0 0.0
  %665 = vmatpush2.msra.mxu0 0.0
  %666 = vmatprep.subr.mxu0 0.0
  %667 = vmatpush2.msra.mxu0 0.0
  %668 = vmatprep.subr.mxu0 0.0
  %669 = vmatpush2.msra.mxu0 0.0
  %670 = vmatprep.subr.mxu0 0.0
  %671 = vmatpush2.msra.mxu0 0.0
  %672 = vmatprep.mubr.f32.mxu0 0.0
  %673 = vmatmul.mubr.f32.gmra.mxu0 %v606
  %v674 = vpop.f32.mrf.mxu0
  %v675 = vadd.f32 0.0, %v674
  %v676 = vpop.f32.mrf.mxu0
  %677 = vdwg.mxu0
  %v678 = vadd.f32 %v172, %v675
  %v679 = vxor.u32 %v678, 2147483648
  %v680 = vmul.f32 %v679, 1.442695
  %v681 = vpow.pop %v680
  %v682 = vadd.f32 %v681, 1.0
  %v683 = vrcp.pop %v682
  %v684 = vmul.f32 1.0, %v683
  %v685 = vmul.f32 %v684, 2.0
  %v686 = vsub.f32 %v685, 1.0
  %v688 = vrot.slane %v595, 6
  %v690 = vmul.f32 %v684, %v688
  %692 = vrot.lane.b32.xlu0 %v686, 64
  %v693 = vpop.permute.xlu0 %692
  %v695 = vmul.f32 %v684, %v693
  %697 = vrot.lane.b32.xlu0 %v695, 32
  %v698 = vpop.permute.xlu0 %697
  %v700 = vadd.f32 %v690, %v698
  %v701 = vtanh.pop %v700
  %703 = vrot.lane.b32.xlu0 %v701, 64
  %v704 = vpop.permute.xlu0 %703
  %v706 = vmul.f32 %v684, %v704
  %708 = vrot.lane.b32.xlu0 %v706, 32
  %v709 = vpop.permute.xlu0 %708
  %v710 = vsel %vm179, %v709, 0
  %712 = vmatprep.subr.mxu0 0.0
  %713 = vmatpush1.msra.mxu0 0.0
  %714 = vmatprep.subr.mxu0 0.0
  %715 = vmatpush1.msra.mxu0 0.0
  %716 = vmatprep.subr.mxu0 0.0
  %717 = vmatpush1.msra.mxu0 0.0
  %718 = vmatprep.subr.mxu0 0.0
  %719 = vmatpush1.msra.mxu0 0.0
  %720 = vmatprep.subr.mxu0 0.0
  %721 = vmatpush1.msra.mxu0 0.0
  %722 = vmatprep.subr.mxu0 0.0
  %723 = vmatpush1.msra.mxu0 0.0
  %724 = vmatprep.subr.mxu0 0.0
  %725 = vmatpush1.msra.mxu0 0.0
  %726 = vmatprep.subr.mxu0 0.0
  %727 = vmatpush1.msra.mxu0 0.0
  %728 = vmatprep.subr.mxu0 0.0
  %729 = vmatpush1.msra.mxu0 0.0
  %730 = vmatprep.subr.mxu0 0.0
  %731 = vmatpush1.msra.mxu0 0.0
  %732 = vmatprep.subr.mxu0 0.0
  %733 = vmatpush1.msra.mxu0 0.0
  %734 = vmatprep.subr.mxu0 0.0
  %735 = vmatpush1.msra.mxu0 0.0
  %736 = vmatprep.subr.mxu0 0.0
  %737 = vmatpush1.msra.mxu0 %v178
  %738 = vmatprep.subr.mxu0 0.0
  %739 = vmatpush1.msra.mxu0 %v177
  %740 = vmatprep.subr.mxu0 0.0
  %741 = vmatpush1.msra.mxu0 %v176
  %742 = vmatprep.subr.mxu0 0.0
  %743 = vmatpush1.msra.mxu0 %v175
  %744 = vmatprep.subr.mxu0 0.0
  %745 = vmatpush2.msra.mxu0 0.0
  %746 = vmatprep.subr.mxu0 0.0
  %747 = vmatpush2.msra.mxu0 0.0
  %748 = vmatprep.subr.mxu0 0.0
  %749 = vmatpush2.msra.mxu0 0.0
  %750 = vmatprep.subr.mxu0 0.0
  %751 = vmatpush2.msra.mxu0 0.0
  %752 = vmatprep.subr.mxu0 0.0
  %753 = vmatpush2.msra.mxu0 0.0
  %754 = vmatprep.subr.mxu0 0.0
  %755 = vmatpush2.msra.mxu0 0.0
  %756 = vmatprep.subr.mxu0 0.0
  %757 = vmatpush2.msra.mxu0 0.0
  %758 = vmatprep.subr.mxu0 0.0
  %759 = vmatpush2.msra.mxu0 0.0
  %760 = vmatprep.subr.mxu0 0.0
  %761 = vmatpush2.msra.mxu0 0.0
  %762 = vmatprep.subr.mxu0 0.0
  %763 = vmatpush2.msra.mxu0 0.0
  %764 = vmatprep.subr.mxu0 0.0
  %765 = vmatpush2.msra.mxu0 0.0
  %766 = vmatprep.subr.mxu0 0.0
  %767 = vmatpush2.msra.mxu0 0.0
  %768 = vmatprep.subr.mxu0 0.0
  %769 = vmatpush2.msra.mxu0 0.0
  %770 = vmatprep.subr.mxu0 0.0
  %771 = vmatpush2.msra.mxu0 0.0
  %772 = vmatprep.subr.mxu0 0.0
  %773 = vmatpush2.msra.mxu0 0.0
  %774 = vmatprep.subr.mxu0 0.0
  %775 = vmatpush2.msra.mxu0 0.0
  %776 = vmatprep.mubr.f32.mxu0 0.0
  %777 = vmatmul.mubr.f32.gmra.mxu0 %v710
  %v778 = vpop.f32.mrf.mxu0
  %v779 = vadd.f32 0.0, %v778
  %v780 = vpop.f32.mrf.mxu0
  %781 = vdwg.mxu0
  %v783 = vrot.slane %v779, 6
  %v785 = vadd.f32 %v172, %v783
  %v786 = vxor.u32 %v785, 2147483648
  %v787 = vmul.f32 %v786, 1.442695
  %v788 = vpow.pop %v787
  %v789 = vadd.f32 %v788, 1.0
  %v790 = vrcp.pop %v789
  %v791 = vmul.f32 1.0, %v790
  %v792 = vmul.f32 %v791, 2.0
  %v793 = vsub.f32 %v792, 1.0
  %v795 = vrot.slane %v700, 6
  %v797 = vmul.f32 %v791, %v795
  %799 = vrot.lane.b32.xlu0 %v793, 64
  %v800 = vpop.permute.xlu0 %799
  %v802 = vmul.f32 %v791, %v800
  %804 = vrot.lane.b32.xlu0 %v802, 32
  %v805 = vpop.permute.xlu0 %804
  %v807 = vadd.f32 %v797, %v805
  %v808 = vtanh.pop %v807
  %810 = vrot.lane.b32.xlu0 %v808, 64
  %v811 = vpop.permute.xlu0 %810
  %v813 = vmul.f32 %v791, %v811
  %v815 = vrot.slane %v813, 2
  %816 = vrot.lane.b32.xlu0 %v815, 32
  %v817 = vpop.permute.xlu0 %816
  %v818 = vsel %vm179, %v817, 0
  %820 = vmatprep.subr.mxu0 0.0
  %821 = vmatpush1.msra.mxu0 0.0
  %822 = vmatprep.subr.mxu0 0.0
  %823 = vmatpush1.msra.mxu0 0.0
  %824 = vmatprep.subr.mxu0 0.0
  %825 = vmatpush1.msra.mxu0 0.0
  %826 = vmatprep.subr.mxu0 0.0
  %827 = vmatpush1.msra.mxu0 0.0
  %828 = vmatprep.subr.mxu0 0.0
  %829 = vmatpush1.msra.mxu0 0.0
  %830 = vmatprep.subr.mxu0 0.0
  %831 = vmatpush1.msra.mxu0 0.0
  %832 = vmatprep.subr.mxu0 0.0
  %833 = vmatpush1.msra.mxu0 0.0
  %834 = vmatprep.subr.mxu0 0.0
  %835 = vmatpush1.msra.mxu0 0.0
  %836 = vmatprep.subr.mxu0 0.0
  %837 = vmatpush1.msra.mxu0 0.0
  %838 = vmatprep.subr.mxu0 0.0
  %839 = vmatpush1.msra.mxu0 0.0
  %840 = vmatprep.subr.mxu0 0.0
  %841 = vmatpush1.msra.mxu0 0.0
  %842 = vmatprep.subr.mxu0 0.0
  %843 = vmatpush1.msra.mxu0 0.0
  %844 = vmatprep.subr.mxu0 0.0
  %845 = vmatpush1.msra.mxu0 %v178
  %846 = vmatprep.subr.mxu0 0.0
  %847 = vmatpush1.msra.mxu0 %v177
  %848 = vmatprep.subr.mxu0 0.0
  %849 = vmatpush1.msra.mxu0 %v176
  %850 = vmatprep.subr.mxu0 0.0
  %851 = vmatpush1.msra.mxu0 %v175
  %852 = vmatprep.subr.mxu0 0.0
  %853 = vmatpush2.msra.mxu0 0.0
  %854 = vmatprep.subr.mxu0 0.0
  %855 = vmatpush2.msra.mxu0 0.0
  %856 = vmatprep.subr.mxu0 0.0
  %857 = vmatpush2.msra.mxu0 0.0
  %858 = vmatprep.subr.mxu0 0.0
  %859 = vmatpush2.msra.mxu0 0.0
  %860 = vmatprep.subr.mxu0 0.0
  %861 = vmatpush2.msra.mxu0 0.0
  %862 = vmatprep.subr.mxu0 0.0
  %863 = vmatpush2.msra.mxu0 0.0
  %864 = vmatprep.subr.mxu0 0.0
  %865 = vmatpush2.msra.mxu0 0.0
  %866 = vmatprep.subr.mxu0 0.0
  %867 = vmatpush2.msra.mxu0 0.0
  %868 = vmatprep.subr.mxu0 0.0
  %869 = vmatpush2.msra.mxu0 0.0
  %870 = vmatprep.subr.mxu0 0.0
  %871 = vmatpush2.msra.mxu0 0.0
  %872 = vmatprep.subr.mxu0 0.0
  %873 = vmatpush2.msra.mxu0 0.0
  %874 = vmatprep.subr.mxu0 0.0
  %875 = vmatpush2.msra.mxu0 0.0
  %876 = vmatprep.subr.mxu0 0.0
  %877 = vmatpush2.msra.mxu0 0.0
  %878 = vmatprep.subr.mxu0 0.0
  %879 = vmatpush2.msra.mxu0 0.0
  %880 = vmatprep.subr.mxu0 0.0
  %881 = vmatpush2.msra.mxu0 0.0
  %882 = vmatprep.subr.mxu0 0.0
  %883 = vmatpush2.msra.mxu0 0.0
  %884 = vmatprep.mubr.f32.mxu0 0.0
  %885 = vmatmul.mubr.f32.gmra.mxu0 %v818
  %v886 = vpop.f32.mrf.mxu0
  %v887 = vadd.f32 0.0, %v886
  %v888 = vpop.f32.mrf.mxu0
  %889 = vdwg.mxu0
  %v891 = vrot.slane %v887, 4
  %v893 = vadd.f32 %v172, %v891
  %v894 = vxor.u32 %v893, 2147483648
  %v895 = vmul.f32 %v894, 1.442695
  %v896 = vpow.pop %v895
  %v897 = vadd.f32 %v896, 1.0
  %v898 = vrcp.pop %v897
  %v899 = vmul.f32 1.0, %v898
  %v900 = vmul.f32 %v899, 2.0
  %v901 = vsub.f32 %v900, 1.0
  %v903 = vrot.slane %v807, 6
  %v905 = vmul.f32 %v899, %v903
  %907 = vrot.lane.b32.xlu0 %v901, 64
  %v908 = vpop.permute.xlu0 %907
  %v910 = vmul.f32 %v899, %v908
  %912 = vrot.lane.b32.xlu0 %v910, 32
  %v913 = vpop.permute.xlu0 %912
  %v915 = vadd.f32 %v905, %v913
  %v916 = vtanh.pop %v915
  %918 = vrot.lane.b32.xlu0 %v916, 64
  %v919 = vpop.permute.xlu0 %918
  %v921 = vmul.f32 %v899, %v919
  %v923 = vrot.slane %v921, 4
  %924 = vrot.lane.b32.xlu0 %v923, 32
  %v925 = vpop.permute.xlu0 %924
  %v926 = vsel %vm179, %v925, 0
  %928 = vmatprep.subr.mxu0 0.0
  %929 = vmatpush1.msra.mxu0 0.0
  %930 = vmatprep.subr.mxu0 0.0
  %931 = vmatpush1.msra.mxu0 0.0
  %932 = vmatprep.subr.mxu0 0.0
  %933 = vmatpush1.msra.mxu0 0.0
  %934 = vmatprep.subr.mxu0 0.0
  %935 = vmatpush1.msra.mxu0 0.0
  %936 = vmatprep.subr.mxu0 0.0
  %937 = vmatpush1.msra.mxu0 0.0
  %938 = vmatprep.subr.mxu0 0.0
  %939 = vmatpush1.msra.mxu0 0.0
  %940 = vmatprep.subr.mxu0 0.0
  %941 = vmatpush1.msra.mxu0 0.0
  %942 = vmatprep.subr.mxu0 0.0
  %943 = vmatpush1.msra.mxu0 0.0
  %944 = vmatprep.subr.mxu0 0.0
  %945 = vmatpush1.msra.mxu0 0.0
  %946 = vmatprep.subr.mxu0 0.0
  %947 = vmatpush1.msra.mxu0 0.0
  %948 = vmatprep.subr.mxu0 0.0
  %949 = vmatpush1.msra.mxu0 0.0
  %950 = vmatprep.subr.mxu0 0.0
  %951 = vmatpush1.msra.mxu0 0.0
  %952 = vmatprep.subr.mxu0 0.0
  %953 = vmatpush1.msra.mxu0 %v178
  %954 = vmatprep.subr.mxu0 0.0
  %955 = vmatpush1.msra.mxu0 %v177
  %956 = vmatprep.subr.mxu0 0.0
  %957 = vmatpush1.msra.mxu0 %v176
  %958 = vmatprep.subr.mxu0 0.0
  %959 = vmatpush1.msra.mxu0 %v175
  %960 = vmatprep.subr.mxu0 0.0
  %961 = vmatpush2.msra.mxu0 0.0
  %962 = vmatprep.subr.mxu0 0.0
  %963 = vmatpush2.msra.mxu0 0.0
  %964 = vmatprep.subr.mxu0 0.0
  %965 = vmatpush2.msra.mxu0 0.0
  %966 = vmatprep.subr.mxu0 0.0
  %967 = vmatpush2.msra.mxu0 0.0
  %968 = vmatprep.subr.mxu0 0.0
  %969 = vmatpush2.msra.mxu0 0.0
  %970 = vmatprep.subr.mxu0 0.0
  %971 = vmatpush2.msra.mxu0 0.0
  %972 = vmatprep.subr.mxu0 0.0
  %973 = vmatpush2.msra.mxu0 0.0
  %974 = vmatprep.subr.mxu0 0.0
  %975 = vmatpush2.msra.mxu0 0.0
  %976 = vmatprep.subr.mxu0 0.0
  %977 = vmatpush2.msra.mxu0 0.0
  %978 = vmatprep.subr.mxu0 0.0
  %979 = vmatpush2.msra.mxu0 0.0
  %980 = vmatprep.subr.mxu0 0.0
  %981 = vmatpush2.msra.mxu0 0.0
  %982 = vmatprep.subr.mxu0 0.0
  %983 = vmatpush2.msra.mxu0 0.0
  %984 = vmatprep.subr.mxu0 0.0
  %985 = vmatpush2.msra.mxu0 0.0
  %986 = vmatprep.subr.mxu0 0.0
  %987 = vmatpush2.msra.mxu0 0.0
  %988 = vmatprep.subr.mxu0 0.0
  %989 = vmatpush2.msra.mxu0 0.0
  %990 = vmatprep.subr.mxu0 0.0
  %991 = vmatpush2.msra.mxu0 0.0
  %992 = vmatprep.mubr.f32.mxu0 0.0
  %993 = vmatmul.mubr.f32.gmra.mxu0 %v926
  %v994 = vpop.f32.mrf.mxu0
  %v995 = vadd.f32 0.0, %v994
  %v996 = vpop.f32.mrf.mxu0
  %997 = vdwg.mxu0
  %v999 = vrot.slane %v995, 2
  %v1001 = vadd.f32 %v172, %v999
  %v1002 = vxor.u32 %v1001, 2147483648
  %v1003 = vmul.f32 %v1002, 1.442695
  %v1004 = vpow.pop %v1003
  %v1005 = vadd.f32 %v1004, 1.0
  %v1006 = vrcp.pop %v1005
  %v1007 = vmul.f32 1.0, %v1006
  %v1008 = vmul.f32 %v1007, 2.0
  %v1009 = vsub.f32 %v1008, 1.0
  %v1011 = vrot.slane %v915, 6
  %v1013 = vmul.f32 %v1007, %v1011
  %1015 = vrot.lane.b32.xlu0 %v1009, 64
  %v1016 = vpop.permute.xlu0 %1015
  %v1018 = vmul.f32 %v1007, %v1016
  %1020 = vrot.lane.b32.xlu0 %v1018, 32
  %v1021 = vpop.permute.xlu0 %1020
  %v1023 = vadd.f32 %v1013, %v1021
  %v1024 = vtanh.pop %v1023
  %1026 = vrot.lane.b32.xlu0 %v1024, 64
  %v1027 = vpop.permute.xlu0 %1026
  %v1029 = vmul.f32 %v1007, %v1027
  %v1030 = vrot.slane %v385, 1
  %v1032 = vrot.slane %v493, 2
  %v1034 = vrot.slane %v601, 3
  %v1036 = vrot.slane %v706, 4
  %v1038 = vrot.slane %v813, 5
  %v1040 = vrot.slane %v921, 6
  %v1043 = vrot.slane %v1029, 7
  %v1045 = vrot.slane %v278, 1
  %v1048 = vrot.slane %v493, 3
  %v1050 = vrot.slane %v601, 4
  %v1052 = vrot.slane %v706, 5
  %v1054 = vrot.slane %v813, 6
  %v1056 = vrot.slane %v921, 7
  %vm1058 = vcmask 1040384
  %v1059 = vsel %vm1058, %v278, %v1030
  %vm1060 = vcmask 1041408
  %v1061 = vsel %vm1060, %v1059, %v1032
  %vm1062 = vcmask 1042432
  %v1063 = vsel %vm1062, %v1061, %v1034
  %vm1064 = vcmask 1043456
  %v1065 = vsel %vm1064, %v1063, %v1036
  %vm1066 = vcmask 1044480
  %v1067 = vsel %vm1066, %v1065, %v1038
  %vm1068 = vcmask 1045504
  %v1069 = vsel %vm1068, %v1067, %v1040
  %vm1070 = vcmask 1046528
  %v1071 = vsel %vm1070, %v1069, %v1043
  %v1072 = vsel %vm1058, %v1045, %v387
  %v1073 = vsel %vm1060, %v1072, %v1048
  %v1074 = vsel %vm1062, %v1073, %v1050
  %v1075 = vsel %vm1064, %v1074, %v1052
  %v1076 = vsel %vm1066, %v1075, %v1054
  %v1077 = vsel %vm1068, %v1076, %v1056
  %v1078 = vsel %vm1070, %v1077, %v1029
  %v1079 = vld [vmem:[%s6] sm:$0xff]
  %v1080 = vld [vmem:[%s6 + $0x8] sm:$0xff]
  %v1081 = vld [vmem:[%s6 + $0x10] sm:$0xff]
  %v1082 = vld [vmem:[%s6 + $0x18] sm:$0xff]
  %v1083 = vld [vmem:[%s7] sm:$0x1]
  %v1085 = vlaneseq
  %v1086 = vshrl.u32 %v1085, 7
  %v1087 = vsub.s32 0, %v1086
  %v1088 = vrot.slane %v1083, %v1087
  %1092 = vrot.lane.b32.xlu0 %v1071, 32
  %v1093 = vpop.permute.xlu0 %1092
  %1094 = vrot.lane.b32.xlu0 %v1078, 32
  %v1095 = vpop.permute.xlu0 %1094
  %v1096 = vsel %vm179, %v1093, 0
  %v1098 = vsel %vm179, %v1095, 0
  %1100 = vmatprep.subr.mxu0 0.0
  %1101 = vmatpush1.msra.mxu0 0.0
  %1102 = vmatprep.subr.mxu0 0.0
  %1103 = vmatpush1.msra.mxu0 0.0
  %1104 = vmatprep.subr.mxu0 0.0
  %1105 = vmatpush1.msra.mxu0 0.0
  %1106 = vmatprep.subr.mxu0 0.0
  %1107 = vmatpush1.msra.mxu0 0.0
  %1108 = vmatprep.subr.mxu0 0.0
  %1109 = vmatpush1.msra.mxu0 0.0
  %1110 = vmatprep.subr.mxu0 0.0
  %1111 = vmatpush1.msra.mxu0 0.0
  %1112 = vmatprep.subr.mxu0 0.0
  %1113 = vmatpush1.msra.mxu0 0.0
  %1114 = vmatprep.subr.mxu0 0.0
  %1115 = vmatpush1.msra.mxu0 0.0
  %1116 = vmatprep.subr.mxu0 0.0
  %1117 = vmatpush1.msra.mxu0 0.0
  %1118 = vmatprep.subr.mxu0 0.0
  %1119 = vmatpush1.msra.mxu0 0.0
  %1120 = vmatprep.subr.mxu0 0.0
  %1121 = vmatpush1.msra.mxu0 0.0
  %1122 = vmatprep.subr.mxu0 0.0
  %1123 = vmatpush1.msra.mxu0 0.0
  %1124 = vmatprep.subr.mxu0 0.0
  %1125 = vmatpush1.msra.mxu0 %v1082
  %1126 = vmatprep.subr.mxu0 0.0
  %1127 = vmatpush1.msra.mxu0 %v1081
  %1128 = vmatprep.subr.mxu0 0.0
  %1129 = vmatpush1.msra.mxu0 %v1080
  %1130 = vmatprep.subr.mxu0 0.0
  %1131 = vmatpush1.msra.mxu0 %v1079
  %1132 = vmatprep.subr.mxu0 0.0
  %1133 = vmatpush2.msra.mxu0 0.0
  %1134 = vmatprep.subr.mxu0 0.0
  %1135 = vmatpush2.msra.mxu0 0.0
  %1136 = vmatprep.subr.mxu0 0.0
  %1137 = vmatpush2.msra.mxu0 0.0
  %1138 = vmatprep.subr.mxu0 0.0
  %1139 = vmatpush2.msra.mxu0 0.0
  %1140 = vmatprep.subr.mxu0 0.0
  %1141 = vmatpush2.msra.mxu0 0.0
  %1142 = vmatprep.subr.mxu0 0.0
  %1143 = vmatpush2.msra.mxu0 0.0
  %1144 = vmatprep.subr.mxu0 0.0
  %1145 = vmatpush2.msra.mxu0 0.0
  %1146 = vmatprep.subr.mxu0 0.0
  %1147 = vmatpush2.msra.mxu0 0.0
  %1148 = vmatprep.subr.mxu0 0.0
  %1149 = vmatpush2.msra.mxu0 0.0
  %1150 = vmatprep.subr.mxu0 0.0
  %1151 = vmatpush2.msra.mxu0 0.0
  %1152 = vmatprep.subr.mxu0 0.0
  %1153 = vmatpush2.msra.mxu0 0.0
  %1154 = vmatprep.subr.mxu0 0.0
  %1155 = vmatpush2.msra.mxu0 0.0
  %1156 = vmatprep.subr.mxu0 0.0
  %1157 = vmatpush2.msra.mxu0 0.0
  %1158 = vmatprep.subr.mxu0 0.0
  %1159 = vmatpush2.msra.mxu0 0.0
  %1160 = vmatprep.subr.mxu0 0.0
  %1161 = vmatpush2.msra.mxu0 0.0
  %1162 = vmatprep.subr.mxu0 0.0
  %1163 = vmatpush2.msra.mxu0 0.0
  %1164 = vmatprep.mubr.f32.mxu0 0.0
  %1165 = vmatmul.mubr.f32.gmra.mxu0 %v1096
  %v1166 = vpop.f32.mrf.mxu0
  %v1167 = vadd.f32 %v1088, %v1166
  %v1168 = vpop.f32.mrf.mxu0
  %1169 = vmatprep.mubr.f32.mxu0 0.0
  %1170 = vmatmul.mubr.f32.gmra.mxu0 %v1098
  %v1171 = vpop.f32.mrf.mxu0
  %v1172 = vadd.f32 %v1088, %v1171
  %v1173 = vpop.f32.mrf.mxu0
  %1174 = vdwg.mxu0
  %v1175 = vmax.f32 %v1167, 0.0
  %v1176 = vmax.f32 %v1172, 0.0
  %v1177 = vld [vmem:[%s8] sm:$0xff]
  %v1178 = vld [vmem:[%s8 + $0x8] sm:$0xff]
  %v1179 = vld [vmem:[%s8 + $0x10] sm:$0xff]
  %v1180 = vld [vmem:[%s8 + $0x18] sm:$0xff]
  %v1181 = vld [vmem:[%s9] sm:$0x1]
  %v1183 = vlaneseq
  %v1184 = vshrl.u32 %v1183, 7
  %v1185 = vsub.s32 0, %v1184
  %v1186 = vrot.slane %v1181, %v1185
  %v1189 = vsel %vm179, %v1175, 0
  %v1192 = vsel %vm179, %v1176, 0
  %1194 = vmatprep.subr.mxu0 0.0
  %1195 = vmatpush1.msra.mxu0 0.0
  %1196 = vmatprep.subr.mxu0 0.0
  %1197 = vmatpush1.msra.mxu0 0.0
  %1198 = vmatprep.subr.mxu0 0.0
  %1199 = vmatpush1.msra.mxu0 0.0
  %1200 = vmatprep.subr.mxu0 0.0
  %1201 = vmatpush1.msra.mxu0 0.0
  %1202 = vmatprep.subr.mxu0 0.0
  %1203 = vmatpush1.msra.mxu0 0.0
  %1204 = vmatprep.subr.mxu0 0.0
  %1205 = vmatpush1.msra.mxu0 0.0
  %1206 = vmatprep.subr.mxu0 0.0
  %1207 = vmatpush1.msra.mxu0 0.0
  %1208 = vmatprep.subr.mxu0 0.0
  %1209 = vmatpush1.msra.mxu0 0.0
  %1210 = vmatprep.subr.mxu0 0.0
  %1211 = vmatpush1.msra.mxu0 0.0
  %1212 = vmatprep.subr.mxu0 0.0
  %1213 = vmatpush1.msra.mxu0 0.0
  %1214 = vmatprep.subr.mxu0 0.0
  %1215 = vmatpush1.msra.mxu0 0.0
  %1216 = vmatprep.subr.mxu0 0.0
  %1217 = vmatpush1.msra.mxu0 0.0
  %1218 = vmatprep.subr.mxu0 0.0
  %1219 = vmatpush1.msra.mxu0 %v1180
  %1220 = vmatprep.subr.mxu0 0.0
  %1221 = vmatpush1.msra.mxu0 %v1179
  %1222 = vmatprep.subr.mxu0 0.0
  %1223 = vmatpush1.msra.mxu0 %v1178
  %1224 = vmatprep.subr.mxu0 0.0
  %1225 = vmatpush1.msra.mxu0 %v1177
  %1226 = vmatprep.subr.mxu0 0.0
  %1227 = vmatpush2.msra.mxu0 0.0
  %1228 = vmatprep.subr.mxu0 0.0
  %1229 = vmatpush2.msra.mxu0 0.0
  %1230 = vmatprep.subr.mxu0 0.0
  %1231 = vmatpush2.msra.mxu0 0.0
  %1232 = vmatprep.subr.mxu0 0.0
  %1233 = vmatpush2.msra.mxu0 0.0
  %1234 = vmatprep.subr.mxu0 0.0
  %1235 = vmatpush2.msra.mxu0 0.0
  %1236 = vmatprep.subr.mxu0 0.0
  %1237 = vmatpush2.msra.mxu0 0.0
  %1238 = vmatprep.subr.mxu0 0.0
  %1239 = vmatpush2.msra.mxu0 0.0
  %1240 = vmatprep.subr.mxu0 0.0
  %1241 = vmatpush2.msra.mxu0 0.0
  %1242 = vmatprep.subr.mxu0 0.0
  %1243 = vmatpush2.msra.mxu0 0.0
  %1244 = vmatprep.subr.mxu0 0.0
  %1245 = vmatpush2.msra.mxu0 0.0
  %1246 = vmatprep.subr.mxu0 0.0
  %1247 = vmatpush2.msra.mxu0 0.0
  %1248 = vmatprep.subr.mxu0 0.0
  %1249 = vmatpush2.msra.mxu0 0.0
  %1250 = vmatprep.subr.mxu0 0.0
  %1251 = vmatpush2.msra.mxu0 0.0
  %1252 = vmatprep.subr.mxu0 0.0
  %1253 = vmatpush2.msra.mxu0 0.0
  %1254 = vmatprep.subr.mxu0 0.0
  %1255 = vmatpush2.msra.mxu0 0.0
  %1256 = vmatprep.subr.mxu0 0.0
  %1257 = vmatpush2.msra.mxu0 0.0
  %1258 = vmatprep.mubr.f32.mxu0 0.0
  %1259 = vmatmul.mubr.f32.gmra.mxu0 %v1189
  %v1260 = vpop.f32.mrf.mxu0
  %v1261 = vadd.f32 %v1186, %v1260
  %v1262 = vpop.f32.mrf.mxu0
  %1263 = vmatprep.mubr.f32.mxu0 0.0
  %1264 = vmatmul.mubr.f32.gmra.mxu0 %v1192
  %v1265 = vpop.f32.mrf.mxu0
  %v1266 = vadd.f32 %v1186, %v1265
  %v1267 = vpop.f32.mrf.mxu0
  %1268 = vdwg.mxu0
  %1269 = vst [vmem:[%s10] sm:$0xff] %v1261
  %1270 = vst [vmem:[%s10 + $0x8] sm:$0xff] %v1266
  // Predicated region
  $region42: #{gaussian_lstm_net_forward.1} parent=0 // pred_check
    _
  $region43: #{gaussian_lstm_net_forward.1} parent=0 // pred_check_branch
    %1272 = sbr.rel (0) target = $region45
  $region44: #{gaussian_lstm_net_forward.1} parent=0 // pred_region
    _
  $region45: #{gaussian_lstm_net_forward.1} parent=0 // pred_fallthru
    _
  // Predicated region
  $region46: #{gaussian_lstm_net_forward.1} parent=0 // pred_check
    _
  $region47: #{gaussian_lstm_net_forward.1} parent=0 // pred_check_branch
    %1274 = sbr.rel (0) target = $region49
  $region48: #{gaussian_lstm_net_forward.1} parent=0 // pred_region
    _
  $region49: #{gaussian_lstm_net_forward.1} parent=0 // pred_fallthru
    _

</llo_original>
